<compile_context>
chip_gen: v6e
topology: v6e:2x2x1
jax: 0.10.0
libtpu: 0.0.40
codegen_flags: <defaults>
</compile_context>

<pallas_src>
import functools

import jax
import jax.numpy as jnp
import numpy as np
from jax.experimental import pallas as pl
from jax.experimental.pallas import tpu as pltpu


def _spatial_attention_kernel(w_ref, mask_ref, x_ref, o_ref, *, C, H, W, K, PAD):
    # w_ref:    (2*K*K,) f32 scalar-prefetch conv weights in SMEM (OIHW, O=1, I=2)
    # mask_ref: (2*K, H*W) f32 boundary masks in VMEM
    #             rows [0, K)   : column masks for dw = kw - PAD
    #             rows [K, 2*K) : row    masks for dh = kh - PAD
    # x_ref:    (BB, C, H*W) input block in VMEM
    # o_ref:    (BB, 1, H*W) output block in VMEM

    # ---- fused single-pass channel mean + max (each channel read once, f32) ----
    x0 = x_ref[:, 0, :].astype(jnp.float32)                # (BB, HW)
    s = x0
    mx = x0
    for c in range(1, C):
        xc = x_ref[:, c, :].astype(jnp.float32)
        s = s + xc
        mx = jnp.maximum(mx, xc)
    avg = s * (1.0 / C)                                    # (BB, HW)

    # ---- stage 1: K column (lane) shifts of avg/max, masked at row edges ----
    # shifted[p] = src[p + dw]  (circular; cross-row contamination and the
    # flat wrap-around are both zeroed by the column mask).
    cs_avg = []
    cs_max = []
    for kw in range(K):
        dw = kw - PAD
        cmask = mask_ref[kw:kw + 1, :]                     # (1, HW) of 0/1, bcast over BB
        a_sh = avg if dw == 0 else jnp.roll(avg, -dw, axis=1)
        m_sh = mx if dw == 0 else jnp.roll(mx, -dw, axis=1)
        cs_avg.append(cmask * a_sh)
        cs_max.append(cmask * m_sh)

    # ---- stage 2: per row offset, combine the K column taps with the conv
    # weights (scalar * vector FMAs), then one whole-row shift + row mask. ----
    acc = None
    for kh in range(K):
        dh = kh - PAD
        u = None
        for kw in range(K):
            w_avg = w_ref[kh * K + kw]                     # scalar, channel 0 (mean)
            w_max = w_ref[K * K + kh * K + kw]             # scalar, channel 1 (max)
            t = w_avg * cs_avg[kw] + w_max * cs_max[kw]
            u = t if u is None else u + t
        u_sh = u if dh == 0 else jnp.roll(u, -dh * W, axis=1)
        rmask = mask_ref[K + kh:K + kh + 1, :]             # (1, HW) of 0/1
        contrib = rmask * u_sh
        acc = contrib if acc is None else acc + contrib

    o_ref[:, 0, :] = jax.nn.sigmoid(acc).astype(o_ref.dtype)


def spatial_attention(x, weight, kernel_size=7):
    """x: (B, C, H, W); weight: (1, 2, K, K) or (2, K, K) float32."""
    assert kernel_size in (3, 7), "kernel size must be 3 or 7"
    pad = 3 if kernel_size == 7 else 1
    K = kernel_size
    B, C, H, W = x.shape
    HW = H * W

    # Batch block: largest divisor of B that is <= 8, so each grid step fills
    # up to 8 sublanes per vector op.  Remaining batch blocks stay a
    # "parallel" grid axis (megacore sharding when B // BB > 1).
    BB = 1
    for d in range(1, min(B, 8) + 1):
        if B % d == 0:
            BB = d

    # Lane-dense layout: spatial dims flattened into the lane axis (free reshape).
    x_flat = x.reshape(B, C, HW)
    w_flat = jnp.asarray(weight, jnp.float32).reshape(-1)  # (2*K*K,)

    # Precompute 0/1 boundary masks on the host (static): column masks for the
    # K horizontal offsets, row masks for the K vertical offsets.
    cols = np.arange(HW) % W
    rows = np.arange(HW) // W
    masks_np = np.zeros((2 * K, HW), np.float32)
    for k in range(K):
        d = k - pad
        masks_np[k] = (cols + d >= 0) & (cols + d < W)
        masks_np[K + k] = (rows + d >= 0) & (rows + d < H)
    masks = jnp.asarray(masks_np)

    kernel = functools.partial(
        _spatial_attention_kernel, C=C, H=H, W=W, K=K, PAD=pad
    )

    out_flat = pl.pallas_call(
        kernel,
        out_shape=jax.ShapeDtypeStruct((B, 1, HW), x.dtype),
        grid_spec=pltpu.PrefetchScalarGridSpec(
            num_scalar_prefetch=1,                              # conv weights -> SMEM
            grid=(B // BB,),
            in_specs=[
                pl.BlockSpec((2 * K, HW), lambda b, w: (0, 0)),     # boundary masks (resident)
                pl.BlockSpec((BB, C, HW), lambda b, w: (b, 0, 0)),  # input images
            ],
            out_specs=pl.BlockSpec((BB, 1, HW), lambda b, w: (b, 0, 0)),
        ),
        compiler_params=pltpu.CompilerParams(
            dimension_semantics=("parallel",),
        ),
    )(w_flat, masks, x_flat)

    return out_flat.reshape(B, 1, H, W)


def _reference(x, weight, kernel_size=7):
    """Pure-JAX reference matching the PyTorch module."""
    pad = 3 if kernel_size == 7 else 1
    avg = jnp.mean(x, axis=1, keepdims=True)
    mx = jnp.max(x, axis=1, keepdims=True)
    cat = jnp.concatenate([avg, mx], axis=1)
    out = jax.lax.conv_general_dilated(
        cat,
        jnp.asarray(weight, jnp.float32).reshape(1, 2, kernel_size, kernel_size),
        window_strides=(1, 1),
        padding=((pad, pad), (pad, pad)),
        dimension_numbers=("NCHW", "OIHW", "NCHW"),
    )
    return jax.nn.sigmoid(out)


if __name__ == "__main__":
    K = 7
    B, C, H, W = 2, 4, 16, 16

    key = jax.random.PRNGKey(0)
    kx, kw = jax.random.split(key)

    # Deterministic weight init mimicking PyTorch Conv2d default (kaiming
    # uniform): bound = 1/sqrt(fan_in), fan_in = 2*K*K.
    fan_in = 2 * K * K
    bound = 1.0 / np.sqrt(fan_in)
    weight = jax.random.uniform(kw, (1, 2, K, K), jnp.float32, -bound, bound)

    x = jax.random.normal(kx, (B, C, H, W), jnp.float32)

    out = spatial_attention(x, weight, kernel_size=K)
    out = jax.block_until_ready(out)

    ref = jax.block_until_ready(_reference(x, weight, kernel_size=K))

    assert out.shape == (B, 1, H, W), out.shape
    np.testing.assert_allclose(np.asarray(out), np.asarray(ref), atol=1e-5, rtol=1e-5)

    print("KERNEL_OK")
</pallas_src>

<mosaic_0001>
module attributes {stable_mosaic.version = 11 : i64} {
  func.func @_spatial_attention_kernel(%arg0: i32, %arg1: memref<98xf32, #tpu.memory_space<smem>>, %arg2: memref<14x256xf32, #tpu.memory_space<vmem>>, %arg3: memref<2x4x256xf32, #tpu.memory_space<vmem>>, %arg4: memref<2x1x256xf32, #tpu.memory_space<vmem>>) attributes {dimension_semantics = [#tpu.dimension_semantics<parallel>], iteration_bounds = array<i64: 1>, scalar_prefetch = 1 : i64, scratch_operands = 0 : i64, tpu.core_type = #tpu.core_type<tc>, window_params = [{pipeline_mode = #tpu.pipeline_mode<synchronous>, transform_indices = @transform_0, window_bounds = array<i64: 14, 256>}, {transform_indices = @transform_1, window_bounds = array<i64: 2, 4, 256>}, {transform_indices = @transform_2, window_bounds = array<i64: 2, 1, 256>}]} {
    %c0 = arith.constant 0 : index
    %c0_0 = arith.constant 0 : index
    %c0_1 = arith.constant 0 : index
    %0 = vector.load %arg3[%c0, %c0_0, %c0_1] : memref<2x4x256xf32, #tpu.memory_space<vmem>>, vector<2x1x256xf32>
    %1 = vector.shape_cast %0 : vector<2x1x256xf32> to vector<2x256xf32>
    %c0_2 = arith.constant 0 : index
    %c1 = arith.constant 1 : index
    %c0_3 = arith.constant 0 : index
    %2 = vector.load %arg3[%c0_2, %c1, %c0_3] : memref<2x4x256xf32, #tpu.memory_space<vmem>>, vector<2x1x256xf32>
    %3 = vector.shape_cast %2 : vector<2x1x256xf32> to vector<2x256xf32>
    %4 = arith.addf %1, %3 : vector<2x256xf32>
    %5 = arith.maximumf %1, %3 : vector<2x256xf32>
    %c0_4 = arith.constant 0 : index
    %c2 = arith.constant 2 : index
    %c0_5 = arith.constant 0 : index
    %6 = vector.load %arg3[%c0_4, %c2, %c0_5] : memref<2x4x256xf32, #tpu.memory_space<vmem>>, vector<2x1x256xf32>
    %7 = vector.shape_cast %6 : vector<2x1x256xf32> to vector<2x256xf32>
    %8 = arith.addf %4, %7 : vector<2x256xf32>
    %9 = arith.maximumf %5, %7 : vector<2x256xf32>
    %c0_6 = arith.constant 0 : index
    %c3 = arith.constant 3 : index
    %c0_7 = arith.constant 0 : index
    %10 = vector.load %arg3[%c0_6, %c3, %c0_7] : memref<2x4x256xf32, #tpu.memory_space<vmem>>, vector<2x1x256xf32>
    %11 = vector.shape_cast %10 : vector<2x1x256xf32> to vector<2x256xf32>
    %12 = arith.addf %8, %11 : vector<2x256xf32>
    %13 = arith.maximumf %9, %11 : vector<2x256xf32>
    %cst = arith.constant 2.500000e-01 : f32
    %14 = vector.broadcast %cst : f32 to vector<2x256xf32>
    %15 = arith.mulf %12, %14 : vector<2x256xf32>
    %c0_8 = arith.constant 0 : index
    %c0_9 = arith.constant 0 : index
    %16 = vector.load %arg2[%c0_8, %c0_9] : memref<14x256xf32, #tpu.memory_space<vmem>>, vector<1x256xf32>
    %17 = vector.extract_strided_slice %15 {offsets = [0, 253], sizes = [2, 3], strides = [1, 1]} : vector<2x256xf32> to vector<2x3xf32>
    %18 = vector.extract_strided_slice %15 {offsets = [0, 0], sizes = [2, 253], strides = [1, 1]} : vector<2x256xf32> to vector<2x253xf32>
    %19 = tpu.concatenate %17, %18 in 1 : vector<2x3xf32>, vector<2x253xf32> -> vector<2x256xf32>
    %20 = vector.extract_strided_slice %13 {offsets = [0, 253], sizes = [2, 3], strides = [1, 1]} : vector<2x256xf32> to vector<2x3xf32>
    %21 = vector.extract_strided_slice %13 {offsets = [0, 0], sizes = [2, 253], strides = [1, 1]} : vector<2x256xf32> to vector<2x253xf32>
    %22 = tpu.concatenate %20, %21 in 1 : vector<2x3xf32>, vector<2x253xf32> -> vector<2x256xf32>
    %23 = vector.broadcast %16 : vector<1x256xf32> to vector<2x256xf32>
    %24 = arith.mulf %23, %19 : vector<2x256xf32>
    %25 = vector.broadcast %16 : vector<1x256xf32> to vector<2x256xf32>
    %26 = arith.mulf %25, %22 : vector<2x256xf32>
    %c1_10 = arith.constant 1 : index
    %c0_11 = arith.constant 0 : index
    %27 = vector.load %arg2[%c1_10, %c0_11] : memref<14x256xf32, #tpu.memory_space<vmem>>, vector<1x256xf32>
    %28 = vector.extract_strided_slice %15 {offsets = [0, 254], sizes = [2, 2], strides = [1, 1]} : vector<2x256xf32> to vector<2x2xf32>
    %29 = vector.extract_strided_slice %15 {offsets = [0, 0], sizes = [2, 254], strides = [1, 1]} : vector<2x256xf32> to vector<2x254xf32>
    %30 = tpu.concatenate %28, %29 in 1 : vector<2x2xf32>, vector<2x254xf32> -> vector<2x256xf32>
    %31 = vector.extract_strided_slice %13 {offsets = [0, 254], sizes = [2, 2], strides = [1, 1]} : vector<2x256xf32> to vector<2x2xf32>
    %32 = vector.extract_strided_slice %13 {offsets = [0, 0], sizes = [2, 254], strides = [1, 1]} : vector<2x256xf32> to vector<2x254xf32>
    %33 = tpu.concatenate %31, %32 in 1 : vector<2x2xf32>, vector<2x254xf32> -> vector<2x256xf32>
    %34 = vector.broadcast %27 : vector<1x256xf32> to vector<2x256xf32>
    %35 = arith.mulf %34, %30 : vector<2x256xf32>
    %36 = vector.broadcast %27 : vector<1x256xf32> to vector<2x256xf32>
    %37 = arith.mulf %36, %33 : vector<2x256xf32>
    %c2_12 = arith.constant 2 : index
    %c0_13 = arith.constant 0 : index
    %38 = vector.load %arg2[%c2_12, %c0_13] : memref<14x256xf32, #tpu.memory_space<vmem>>, vector<1x256xf32>
    %39 = vector.extract_strided_slice %15 {offsets = [0, 255], sizes = [2, 1], strides = [1, 1]} : vector<2x256xf32> to vector<2x1xf32>
    %40 = vector.extract_strided_slice %15 {offsets = [0, 0], sizes = [2, 255], strides = [1, 1]} : vector<2x256xf32> to vector<2x255xf32>
    %41 = tpu.concatenate %39, %40 in 1 : vector<2x1xf32>, vector<2x255xf32> -> vector<2x256xf32>
    %42 = vector.extract_strided_slice %13 {offsets = [0, 255], sizes = [2, 1], strides = [1, 1]} : vector<2x256xf32> to vector<2x1xf32>
    %43 = vector.extract_strided_slice %13 {offsets = [0, 0], sizes = [2, 255], strides = [1, 1]} : vector<2x256xf32> to vector<2x255xf32>
    %44 = tpu.concatenate %42, %43 in 1 : vector<2x1xf32>, vector<2x255xf32> -> vector<2x256xf32>
    %45 = vector.broadcast %38 : vector<1x256xf32> to vector<2x256xf32>
    %46 = arith.mulf %45, %41 : vector<2x256xf32>
    %47 = vector.broadcast %38 : vector<1x256xf32> to vector<2x256xf32>
    %48 = arith.mulf %47, %44 : vector<2x256xf32>
    %c3_14 = arith.constant 3 : index
    %c0_15 = arith.constant 0 : index
    %49 = vector.load %arg2[%c3_14, %c0_15] : memref<14x256xf32, #tpu.memory_space<vmem>>, vector<1x256xf32>
    %50 = vector.broadcast %49 : vector<1x256xf32> to vector<2x256xf32>
    %51 = arith.mulf %50, %15 : vector<2x256xf32>
    %52 = vector.broadcast %49 : vector<1x256xf32> to vector<2x256xf32>
    %53 = arith.mulf %52, %13 : vector<2x256xf32>
    %c4 = arith.constant 4 : index
    %c0_16 = arith.constant 0 : index
    %54 = vector.load %arg2[%c4, %c0_16] : memref<14x256xf32, #tpu.memory_space<vmem>>, vector<1x256xf32>
    %55 = vector.extract_strided_slice %15 {offsets = [0, 1], sizes = [2, 255], strides = [1, 1]} : vector<2x256xf32> to vector<2x255xf32>
    %56 = vector.extract_strided_slice %15 {offsets = [0, 0], sizes = [2, 1], strides = [1, 1]} : vector<2x256xf32> to vector<2x1xf32>
    %57 = tpu.concatenate %55, %56 in 1 : vector<2x255xf32>, vector<2x1xf32> -> vector<2x256xf32>
    %58 = vector.extract_strided_slice %13 {offsets = [0, 1], sizes = [2, 255], strides = [1, 1]} : vector<2x256xf32> to vector<2x255xf32>
    %59 = vector.extract_strided_slice %13 {offsets = [0, 0], sizes = [2, 1], strides = [1, 1]} : vector<2x256xf32> to vector<2x1xf32>
    %60 = tpu.concatenate %58, %59 in 1 : vector<2x255xf32>, vector<2x1xf32> -> vector<2x256xf32>
    %61 = vector.broadcast %54 : vector<1x256xf32> to vector<2x256xf32>
    %62 = arith.mulf %61, %57 : vector<2x256xf32>
    %63 = vector.broadcast %54 : vector<1x256xf32> to vector<2x256xf32>
    %64 = arith.mulf %63, %60 : vector<2x256xf32>
    %c5 = arith.constant 5 : index
    %c0_17 = arith.constant 0 : index
    %65 = vector.load %arg2[%c5, %c0_17] : memref<14x256xf32, #tpu.memory_space<vmem>>, vector<1x256xf32>
    %66 = vector.extract_strided_slice %15 {offsets = [0, 2], sizes = [2, 254], strides = [1, 1]} : vector<2x256xf32> to vector<2x254xf32>
    %67 = vector.extract_strided_slice %15 {offsets = [0, 0], sizes = [2, 2], strides = [1, 1]} : vector<2x256xf32> to vector<2x2xf32>
    %68 = tpu.concatenate %66, %67 in 1 : vector<2x254xf32>, vector<2x2xf32> -> vector<2x256xf32>
    %69 = vector.extract_strided_slice %13 {offsets = [0, 2], sizes = [2, 254], strides = [1, 1]} : vector<2x256xf32> to vector<2x254xf32>
    %70 = vector.extract_strided_slice %13 {offsets = [0, 0], sizes = [2, 2], strides = [1, 1]} : vector<2x256xf32> to vector<2x2xf32>
    %71 = tpu.concatenate %69, %70 in 1 : vector<2x254xf32>, vector<2x2xf32> -> vector<2x256xf32>
    %72 = vector.broadcast %65 : vector<1x256xf32> to vector<2x256xf32>
    %73 = arith.mulf %72, %68 : vector<2x256xf32>
    %74 = vector.broadcast %65 : vector<1x256xf32> to vector<2x256xf32>
    %75 = arith.mulf %74, %71 : vector<2x256xf32>
    %c6 = arith.constant 6 : index
    %c0_18 = arith.constant 0 : index
    %76 = vector.load %arg2[%c6, %c0_18] : memref<14x256xf32, #tpu.memory_space<vmem>>, vector<1x256xf32>
    %77 = vector.extract_strided_slice %15 {offsets = [0, 3], sizes = [2, 253], strides = [1, 1]} : vector<2x256xf32> to vector<2x253xf32>
    %78 = vector.extract_strided_slice %15 {offsets = [0, 0], sizes = [2, 3], strides = [1, 1]} : vector<2x256xf32> to vector<2x3xf32>
    %79 = tpu.concatenate %77, %78 in 1 : vector<2x253xf32>, vector<2x3xf32> -> vector<2x256xf32>
    %80 = vector.extract_strided_slice %13 {offsets = [0, 3], sizes = [2, 253], strides = [1, 1]} : vector<2x256xf32> to vector<2x253xf32>
    %81 = vector.extract_strided_slice %13 {offsets = [0, 0], sizes = [2, 3], strides = [1, 1]} : vector<2x256xf32> to vector<2x3xf32>
    %82 = tpu.concatenate %80, %81 in 1 : vector<2x253xf32>, vector<2x3xf32> -> vector<2x256xf32>
    %83 = vector.broadcast %76 : vector<1x256xf32> to vector<2x256xf32>
    %84 = arith.mulf %83, %79 : vector<2x256xf32>
    %85 = vector.broadcast %76 : vector<1x256xf32> to vector<2x256xf32>
    %86 = arith.mulf %85, %82 : vector<2x256xf32>
    %c0_19 = arith.constant 0 : index
    %87 = memref.load %arg1[%c0_19] : memref<98xf32, #tpu.memory_space<smem>>
    %c49 = arith.constant 49 : index
    %88 = memref.load %arg1[%c49] : memref<98xf32, #tpu.memory_space<smem>>
    %89 = vector.broadcast %87 : f32 to vector<2x256xf32>
    %90 = arith.mulf %89, %24 : vector<2x256xf32>
    %91 = vector.broadcast %88 : f32 to vector<2x256xf32>
    %92 = arith.mulf %91, %26 : vector<2x256xf32>
    %93 = arith.addf %90, %92 : vector<2x256xf32>
    %c1_20 = arith.constant 1 : index
    %94 = memref.load %arg1[%c1_20] : memref<98xf32, #tpu.memory_space<smem>>
    %c50 = arith.constant 50 : index
    %95 = memref.load %arg1[%c50] : memref<98xf32, #tpu.memory_space<smem>>
    %96 = vector.broadcast %94 : f32 to vector<2x256xf32>
    %97 = arith.mulf %96, %35 : vector<2x256xf32>
    %98 = vector.broadcast %95 : f32 to vector<2x256xf32>
    %99 = arith.mulf %98, %37 : vector<2x256xf32>
    %100 = arith.addf %97, %99 : vector<2x256xf32>
    %101 = arith.addf %93, %100 : vector<2x256xf32>
    %c2_21 = arith.constant 2 : index
    %102 = memref.load %arg1[%c2_21] : memref<98xf32, #tpu.memory_space<smem>>
    %c51 = arith.constant 51 : index
    %103 = memref.load %arg1[%c51] : memref<98xf32, #tpu.memory_space<smem>>
    %104 = vector.broadcast %102 : f32 to vector<2x256xf32>
    %105 = arith.mulf %104, %46 : vector<2x256xf32>
    %106 = vector.broadcast %103 : f32 to vector<2x256xf32>
    %107 = arith.mulf %106, %48 : vector<2x256xf32>
    %108 = arith.addf %105, %107 : vector<2x256xf32>
    %109 = arith.addf %101, %108 : vector<2x256xf32>
    %c3_22 = arith.constant 3 : index
    %110 = memref.load %arg1[%c3_22] : memref<98xf32, #tpu.memory_space<smem>>
    %c52 = arith.constant 52 : index
    %111 = memref.load %arg1[%c52] : memref<98xf32, #tpu.memory_space<smem>>
    %112 = vector.broadcast %110 : f32 to vector<2x256xf32>
    %113 = arith.mulf %112, %51 : vector<2x256xf32>
    %114 = vector.broadcast %111 : f32 to vector<2x256xf32>
    %115 = arith.mulf %114, %53 : vector<2x256xf32>
    %116 = arith.addf %113, %115 : vector<2x256xf32>
    %117 = arith.addf %109, %116 : vector<2x256xf32>
    %c4_23 = arith.constant 4 : index
    %118 = memref.load %arg1[%c4_23] : memref<98xf32, #tpu.memory_space<smem>>
    %c53 = arith.constant 53 : index
    %119 = memref.load %arg1[%c53] : memref<98xf32, #tpu.memory_space<smem>>
    %120 = vector.broadcast %118 : f32 to vector<2x256xf32>
    %121 = arith.mulf %120, %62 : vector<2x256xf32>
    %122 = vector.broadcast %119 : f32 to vector<2x256xf32>
    %123 = arith.mulf %122, %64 : vector<2x256xf32>
    %124 = arith.addf %121, %123 : vector<2x256xf32>
    %125 = arith.addf %117, %124 : vector<2x256xf32>
    %c5_24 = arith.constant 5 : index
    %126 = memref.load %arg1[%c5_24] : memref<98xf32, #tpu.memory_space<smem>>
    %c54 = arith.constant 54 : index
    %127 = memref.load %arg1[%c54] : memref<98xf32, #tpu.memory_space<smem>>
    %128 = vector.broadcast %126 : f32 to vector<2x256xf32>
    %129 = arith.mulf %128, %73 : vector<2x256xf32>
    %130 = vector.broadcast %127 : f32 to vector<2x256xf32>
    %131 = arith.mulf %130, %75 : vector<2x256xf32>
    %132 = arith.addf %129, %131 : vector<2x256xf32>
    %133 = arith.addf %125, %132 : vector<2x256xf32>
    %c6_25 = arith.constant 6 : index
    %134 = memref.load %arg1[%c6_25] : memref<98xf32, #tpu.memory_space<smem>>
    %c55 = arith.constant 55 : index
    %135 = memref.load %arg1[%c55] : memref<98xf32, #tpu.memory_space<smem>>
    %136 = vector.broadcast %134 : f32 to vector<2x256xf32>
    %137 = arith.mulf %136, %84 : vector<2x256xf32>
    %138 = vector.broadcast %135 : f32 to vector<2x256xf32>
    %139 = arith.mulf %138, %86 : vector<2x256xf32>
    %140 = arith.addf %137, %139 : vector<2x256xf32>
    %141 = arith.addf %133, %140 : vector<2x256xf32>
    %142 = vector.extract_strided_slice %141 {offsets = [0, 208], sizes = [2, 48], strides = [1, 1]} : vector<2x256xf32> to vector<2x48xf32>
    %143 = vector.extract_strided_slice %141 {offsets = [0, 0], sizes = [2, 208], strides = [1, 1]} : vector<2x256xf32> to vector<2x208xf32>
    %144 = tpu.concatenate %142, %143 in 1 : vector<2x48xf32>, vector<2x208xf32> -> vector<2x256xf32>
    %c7 = arith.constant 7 : index
    %c0_26 = arith.constant 0 : index
    %145 = vector.load %arg2[%c7, %c0_26] : memref<14x256xf32, #tpu.memory_space<vmem>>, vector<1x256xf32>
    %146 = vector.broadcast %145 : vector<1x256xf32> to vector<2x256xf32>
    %147 = arith.mulf %146, %144 : vector<2x256xf32>
    %c7_27 = arith.constant 7 : index
    %148 = memref.load %arg1[%c7_27] : memref<98xf32, #tpu.memory_space<smem>>
    %c56 = arith.constant 56 : index
    %149 = memref.load %arg1[%c56] : memref<98xf32, #tpu.memory_space<smem>>
    %150 = vector.broadcast %148 : f32 to vector<2x256xf32>
    %151 = arith.mulf %150, %24 : vector<2x256xf32>
    %152 = vector.broadcast %149 : f32 to vector<2x256xf32>
    %153 = arith.mulf %152, %26 : vector<2x256xf32>
    %154 = arith.addf %151, %153 : vector<2x256xf32>
    %c8 = arith.constant 8 : index
    %155 = memref.load %arg1[%c8] : memref<98xf32, #tpu.memory_space<smem>>
    %c57 = arith.constant 57 : index
    %156 = memref.load %arg1[%c57] : memref<98xf32, #tpu.memory_space<smem>>
    %157 = vector.broadcast %155 : f32 to vector<2x256xf32>
    %158 = arith.mulf %157, %35 : vector<2x256xf32>
    %159 = vector.broadcast %156 : f32 to vector<2x256xf32>
    %160 = arith.mulf %159, %37 : vector<2x256xf32>
    %161 = arith.addf %158, %160 : vector<2x256xf32>
    %162 = arith.addf %154, %161 : vector<2x256xf32>
    %c9 = arith.constant 9 : index
    %163 = memref.load %arg1[%c9] : memref<98xf32, #tpu.memory_space<smem>>
    %c58 = arith.constant 58 : index
    %164 = memref.load %arg1[%c58] : memref<98xf32, #tpu.memory_space<smem>>
    %165 = vector.broadcast %163 : f32 to vector<2x256xf32>
    %166 = arith.mulf %165, %46 : vector<2x256xf32>
    %167 = vector.broadcast %164 : f32 to vector<2x256xf32>
    %168 = arith.mulf %167, %48 : vector<2x256xf32>
    %169 = arith.addf %166, %168 : vector<2x256xf32>
    %170 = arith.addf %162, %169 : vector<2x256xf32>
    %c10 = arith.constant 10 : index
    %171 = memref.load %arg1[%c10] : memref<98xf32, #tpu.memory_space<smem>>
    %c59 = arith.constant 59 : index
    %172 = memref.load %arg1[%c59] : memref<98xf32, #tpu.memory_space<smem>>
    %173 = vector.broadcast %171 : f32 to vector<2x256xf32>
    %174 = arith.mulf %173, %51 : vector<2x256xf32>
    %175 = vector.broadcast %172 : f32 to vector<2x256xf32>
    %176 = arith.mulf %175, %53 : vector<2x256xf32>
    %177 = arith.addf %174, %176 : vector<2x256xf32>
    %178 = arith.addf %170, %177 : vector<2x256xf32>
    %c11 = arith.constant 11 : index
    %179 = memref.load %arg1[%c11] : memref<98xf32, #tpu.memory_space<smem>>
    %c60 = arith.constant 60 : index
    %180 = memref.load %arg1[%c60] : memref<98xf32, #tpu.memory_space<smem>>
    %181 = vector.broadcast %179 : f32 to vector<2x256xf32>
    %182 = arith.mulf %181, %62 : vector<2x256xf32>
    %183 = vector.broadcast %180 : f32 to vector<2x256xf32>
    %184 = arith.mulf %183, %64 : vector<2x256xf32>
    %185 = arith.addf %182, %184 : vector<2x256xf32>
    %186 = arith.addf %178, %185 : vector<2x256xf32>
    %c12 = arith.constant 12 : index
    %187 = memref.load %arg1[%c12] : memref<98xf32, #tpu.memory_space<smem>>
    %c61 = arith.constant 61 : index
    %188 = memref.load %arg1[%c61] : memref<98xf32, #tpu.memory_space<smem>>
    %189 = vector.broadcast %187 : f32 to vector<2x256xf32>
    %190 = arith.mulf %189, %73 : vector<2x256xf32>
    %191 = vector.broadcast %188 : f32 to vector<2x256xf32>
    %192 = arith.mulf %191, %75 : vector<2x256xf32>
    %193 = arith.addf %190, %192 : vector<2x256xf32>
    %194 = arith.addf %186, %193 : vector<2x256xf32>
    %c13 = arith.constant 13 : index
    %195 = memref.load %arg1[%c13] : memref<98xf32, #tpu.memory_space<smem>>
    %c62 = arith.constant 62 : index
    %196 = memref.load %arg1[%c62] : memref<98xf32, #tpu.memory_space<smem>>
    %197 = vector.broadcast %195 : f32 to vector<2x256xf32>
    %198 = arith.mulf %197, %84 : vector<2x256xf32>
    %199 = vector.broadcast %196 : f32 to vector<2x256xf32>
    %200 = arith.mulf %199, %86 : vector<2x256xf32>
    %201 = arith.addf %198, %200 : vector<2x256xf32>
    %202 = arith.addf %194, %201 : vector<2x256xf32>
    %203 = vector.extract_strided_slice %202 {offsets = [0, 224], sizes = [2, 32], strides = [1, 1]} : vector<2x256xf32> to vector<2x32xf32>
    %204 = vector.extract_strided_slice %202 {offsets = [0, 0], sizes = [2, 224], strides = [1, 1]} : vector<2x256xf32> to vector<2x224xf32>
    %205 = tpu.concatenate %203, %204 in 1 : vector<2x32xf32>, vector<2x224xf32> -> vector<2x256xf32>
    %c8_28 = arith.constant 8 : index
    %c0_29 = arith.constant 0 : index
    %206 = vector.load %arg2[%c8_28, %c0_29] : memref<14x256xf32, #tpu.memory_space<vmem>>, vector<1x256xf32>
    %207 = vector.broadcast %206 : vector<1x256xf32> to vector<2x256xf32>
    %208 = arith.mulf %207, %205 : vector<2x256xf32>
    %209 = arith.addf %147, %208 : vector<2x256xf32>
    %c14 = arith.constant 14 : index
    %210 = memref.load %arg1[%c14] : memref<98xf32, #tpu.memory_space<smem>>
    %c63 = arith.constant 63 : index
    %211 = memref.load %arg1[%c63] : memref<98xf32, #tpu.memory_space<smem>>
    %212 = vector.broadcast %210 : f32 to vector<2x256xf32>
    %213 = arith.mulf %212, %24 : vector<2x256xf32>
    %214 = vector.broadcast %211 : f32 to vector<2x256xf32>
    %215 = arith.mulf %214, %26 : vector<2x256xf32>
    %216 = arith.addf %213, %215 : vector<2x256xf32>
    %c15 = arith.constant 15 : index
    %217 = memref.load %arg1[%c15] : memref<98xf32, #tpu.memory_space<smem>>
    %c64 = arith.constant 64 : index
    %218 = memref.load %arg1[%c64] : memref<98xf32, #tpu.memory_space<smem>>
    %219 = vector.broadcast %217 : f32 to vector<2x256xf32>
    %220 = arith.mulf %219, %35 : vector<2x256xf32>
    %221 = vector.broadcast %218 : f32 to vector<2x256xf32>
    %222 = arith.mulf %221, %37 : vector<2x256xf32>
    %223 = arith.addf %220, %222 : vector<2x256xf32>
    %224 = arith.addf %216, %223 : vector<2x256xf32>
    %c16 = arith.constant 16 : index
    %225 = memref.load %arg1[%c16] : memref<98xf32, #tpu.memory_space<smem>>
    %c65 = arith.constant 65 : index
    %226 = memref.load %arg1[%c65] : memref<98xf32, #tpu.memory_space<smem>>
    %227 = vector.broadcast %225 : f32 to vector<2x256xf32>
    %228 = arith.mulf %227, %46 : vector<2x256xf32>
    %229 = vector.broadcast %226 : f32 to vector<2x256xf32>
    %230 = arith.mulf %229, %48 : vector<2x256xf32>
    %231 = arith.addf %228, %230 : vector<2x256xf32>
    %232 = arith.addf %224, %231 : vector<2x256xf32>
    %c17 = arith.constant 17 : index
    %233 = memref.load %arg1[%c17] : memref<98xf32, #tpu.memory_space<smem>>
    %c66 = arith.constant 66 : index
    %234 = memref.load %arg1[%c66] : memref<98xf32, #tpu.memory_space<smem>>
    %235 = vector.broadcast %233 : f32 to vector<2x256xf32>
    %236 = arith.mulf %235, %51 : vector<2x256xf32>
    %237 = vector.broadcast %234 : f32 to vector<2x256xf32>
    %238 = arith.mulf %237, %53 : vector<2x256xf32>
    %239 = arith.addf %236, %238 : vector<2x256xf32>
    %240 = arith.addf %232, %239 : vector<2x256xf32>
    %c18 = arith.constant 18 : index
    %241 = memref.load %arg1[%c18] : memref<98xf32, #tpu.memory_space<smem>>
    %c67 = arith.constant 67 : index
    %242 = memref.load %arg1[%c67] : memref<98xf32, #tpu.memory_space<smem>>
    %243 = vector.broadcast %241 : f32 to vector<2x256xf32>
    %244 = arith.mulf %243, %62 : vector<2x256xf32>
    %245 = vector.broadcast %242 : f32 to vector<2x256xf32>
    %246 = arith.mulf %245, %64 : vector<2x256xf32>
    %247 = arith.addf %244, %246 : vector<2x256xf32>
    %248 = arith.addf %240, %247 : vector<2x256xf32>
    %c19 = arith.constant 19 : index
    %249 = memref.load %arg1[%c19] : memref<98xf32, #tpu.memory_space<smem>>
    %c68 = arith.constant 68 : index
    %250 = memref.load %arg1[%c68] : memref<98xf32, #tpu.memory_space<smem>>
    %251 = vector.broadcast %249 : f32 to vector<2x256xf32>
    %252 = arith.mulf %251, %73 : vector<2x256xf32>
    %253 = vector.broadcast %250 : f32 to vector<2x256xf32>
    %254 = arith.mulf %253, %75 : vector<2x256xf32>
    %255 = arith.addf %252, %254 : vector<2x256xf32>
    %256 = arith.addf %248, %255 : vector<2x256xf32>
    %c20 = arith.constant 20 : index
    %257 = memref.load %arg1[%c20] : memref<98xf32, #tpu.memory_space<smem>>
    %c69 = arith.constant 69 : index
    %258 = memref.load %arg1[%c69] : memref<98xf32, #tpu.memory_space<smem>>
    %259 = vector.broadcast %257 : f32 to vector<2x256xf32>
    %260 = arith.mulf %259, %84 : vector<2x256xf32>
    %261 = vector.broadcast %258 : f32 to vector<2x256xf32>
    %262 = arith.mulf %261, %86 : vector<2x256xf32>
    %263 = arith.addf %260, %262 : vector<2x256xf32>
    %264 = arith.addf %256, %263 : vector<2x256xf32>
    %265 = vector.extract_strided_slice %264 {offsets = [0, 240], sizes = [2, 16], strides = [1, 1]} : vector<2x256xf32> to vector<2x16xf32>
    %266 = vector.extract_strided_slice %264 {offsets = [0, 0], sizes = [2, 240], strides = [1, 1]} : vector<2x256xf32> to vector<2x240xf32>
    %267 = tpu.concatenate %265, %266 in 1 : vector<2x16xf32>, vector<2x240xf32> -> vector<2x256xf32>
    %c9_30 = arith.constant 9 : index
    %c0_31 = arith.constant 0 : index
    %268 = vector.load %arg2[%c9_30, %c0_31] : memref<14x256xf32, #tpu.memory_space<vmem>>, vector<1x256xf32>
    %269 = vector.broadcast %268 : vector<1x256xf32> to vector<2x256xf32>
    %270 = arith.mulf %269, %267 : vector<2x256xf32>
    %271 = arith.addf %209, %270 : vector<2x256xf32>
    %c21 = arith.constant 21 : index
    %272 = memref.load %arg1[%c21] : memref<98xf32, #tpu.memory_space<smem>>
    %c70 = arith.constant 70 : index
    %273 = memref.load %arg1[%c70] : memref<98xf32, #tpu.memory_space<smem>>
    %274 = vector.broadcast %272 : f32 to vector<2x256xf32>
    %275 = arith.mulf %274, %24 : vector<2x256xf32>
    %276 = vector.broadcast %273 : f32 to vector<2x256xf32>
    %277 = arith.mulf %276, %26 : vector<2x256xf32>
    %278 = arith.addf %275, %277 : vector<2x256xf32>
    %c22 = arith.constant 22 : index
    %279 = memref.load %arg1[%c22] : memref<98xf32, #tpu.memory_space<smem>>
    %c71 = arith.constant 71 : index
    %280 = memref.load %arg1[%c71] : memref<98xf32, #tpu.memory_space<smem>>
    %281 = vector.broadcast %279 : f32 to vector<2x256xf32>
    %282 = arith.mulf %281, %35 : vector<2x256xf32>
    %283 = vector.broadcast %280 : f32 to vector<2x256xf32>
    %284 = arith.mulf %283, %37 : vector<2x256xf32>
    %285 = arith.addf %282, %284 : vector<2x256xf32>
    %286 = arith.addf %278, %285 : vector<2x256xf32>
    %c23 = arith.constant 23 : index
    %287 = memref.load %arg1[%c23] : memref<98xf32, #tpu.memory_space<smem>>
    %c72 = arith.constant 72 : index
    %288 = memref.load %arg1[%c72] : memref<98xf32, #tpu.memory_space<smem>>
    %289 = vector.broadcast %287 : f32 to vector<2x256xf32>
    %290 = arith.mulf %289, %46 : vector<2x256xf32>
    %291 = vector.broadcast %288 : f32 to vector<2x256xf32>
    %292 = arith.mulf %291, %48 : vector<2x256xf32>
    %293 = arith.addf %290, %292 : vector<2x256xf32>
    %294 = arith.addf %286, %293 : vector<2x256xf32>
    %c24 = arith.constant 24 : index
    %295 = memref.load %arg1[%c24] : memref<98xf32, #tpu.memory_space<smem>>
    %c73 = arith.constant 73 : index
    %296 = memref.load %arg1[%c73] : memref<98xf32, #tpu.memory_space<smem>>
    %297 = vector.broadcast %295 : f32 to vector<2x256xf32>
    %298 = arith.mulf %297, %51 : vector<2x256xf32>
    %299 = vector.broadcast %296 : f32 to vector<2x256xf32>
    %300 = arith.mulf %299, %53 : vector<2x256xf32>
    %301 = arith.addf %298, %300 : vector<2x256xf32>
    %302 = arith.addf %294, %301 : vector<2x256xf32>
    %c25 = arith.constant 25 : index
    %303 = memref.load %arg1[%c25] : memref<98xf32, #tpu.memory_space<smem>>
    %c74 = arith.constant 74 : index
    %304 = memref.load %arg1[%c74] : memref<98xf32, #tpu.memory_space<smem>>
    %305 = vector.broadcast %303 : f32 to vector<2x256xf32>
    %306 = arith.mulf %305, %62 : vector<2x256xf32>
    %307 = vector.broadcast %304 : f32 to vector<2x256xf32>
    %308 = arith.mulf %307, %64 : vector<2x256xf32>
    %309 = arith.addf %306, %308 : vector<2x256xf32>
    %310 = arith.addf %302, %309 : vector<2x256xf32>
    %c26 = arith.constant 26 : index
    %311 = memref.load %arg1[%c26] : memref<98xf32, #tpu.memory_space<smem>>
    %c75 = arith.constant 75 : index
    %312 = memref.load %arg1[%c75] : memref<98xf32, #tpu.memory_space<smem>>
    %313 = vector.broadcast %311 : f32 to vector<2x256xf32>
    %314 = arith.mulf %313, %73 : vector<2x256xf32>
    %315 = vector.broadcast %312 : f32 to vector<2x256xf32>
    %316 = arith.mulf %315, %75 : vector<2x256xf32>
    %317 = arith.addf %314, %316 : vector<2x256xf32>
    %318 = arith.addf %310, %317 : vector<2x256xf32>
    %c27 = arith.constant 27 : index
    %319 = memref.load %arg1[%c27] : memref<98xf32, #tpu.memory_space<smem>>
    %c76 = arith.constant 76 : index
    %320 = memref.load %arg1[%c76] : memref<98xf32, #tpu.memory_space<smem>>
    %321 = vector.broadcast %319 : f32 to vector<2x256xf32>
    %322 = arith.mulf %321, %84 : vector<2x256xf32>
    %323 = vector.broadcast %320 : f32 to vector<2x256xf32>
    %324 = arith.mulf %323, %86 : vector<2x256xf32>
    %325 = arith.addf %322, %324 : vector<2x256xf32>
    %326 = arith.addf %318, %325 : vector<2x256xf32>
    %c10_32 = arith.constant 10 : index
    %c0_33 = arith.constant 0 : index
    %327 = vector.load %arg2[%c10_32, %c0_33] : memref<14x256xf32, #tpu.memory_space<vmem>>, vector<1x256xf32>
    %328 = vector.broadcast %327 : vector<1x256xf32> to vector<2x256xf32>
    %329 = arith.mulf %328, %326 : vector<2x256xf32>
    %330 = arith.addf %271, %329 : vector<2x256xf32>
    %c28 = arith.constant 28 : index
    %331 = memref.load %arg1[%c28] : memref<98xf32, #tpu.memory_space<smem>>
    %c77 = arith.constant 77 : index
    %332 = memref.load %arg1[%c77] : memref<98xf32, #tpu.memory_space<smem>>
    %333 = vector.broadcast %331 : f32 to vector<2x256xf32>
    %334 = arith.mulf %333, %24 : vector<2x256xf32>
    %335 = vector.broadcast %332 : f32 to vector<2x256xf32>
    %336 = arith.mulf %335, %26 : vector<2x256xf32>
    %337 = arith.addf %334, %336 : vector<2x256xf32>
    %c29 = arith.constant 29 : index
    %338 = memref.load %arg1[%c29] : memref<98xf32, #tpu.memory_space<smem>>
    %c78 = arith.constant 78 : index
    %339 = memref.load %arg1[%c78] : memref<98xf32, #tpu.memory_space<smem>>
    %340 = vector.broadcast %338 : f32 to vector<2x256xf32>
    %341 = arith.mulf %340, %35 : vector<2x256xf32>
    %342 = vector.broadcast %339 : f32 to vector<2x256xf32>
    %343 = arith.mulf %342, %37 : vector<2x256xf32>
    %344 = arith.addf %341, %343 : vector<2x256xf32>
    %345 = arith.addf %337, %344 : vector<2x256xf32>
    %c30 = arith.constant 30 : index
    %346 = memref.load %arg1[%c30] : memref<98xf32, #tpu.memory_space<smem>>
    %c79 = arith.constant 79 : index
    %347 = memref.load %arg1[%c79] : memref<98xf32, #tpu.memory_space<smem>>
    %348 = vector.broadcast %346 : f32 to vector<2x256xf32>
    %349 = arith.mulf %348, %46 : vector<2x256xf32>
    %350 = vector.broadcast %347 : f32 to vector<2x256xf32>
    %351 = arith.mulf %350, %48 : vector<2x256xf32>
    %352 = arith.addf %349, %351 : vector<2x256xf32>
    %353 = arith.addf %345, %352 : vector<2x256xf32>
    %c31 = arith.constant 31 : index
    %354 = memref.load %arg1[%c31] : memref<98xf32, #tpu.memory_space<smem>>
    %c80 = arith.constant 80 : index
    %355 = memref.load %arg1[%c80] : memref<98xf32, #tpu.memory_space<smem>>
    %356 = vector.broadcast %354 : f32 to vector<2x256xf32>
    %357 = arith.mulf %356, %51 : vector<2x256xf32>
    %358 = vector.broadcast %355 : f32 to vector<2x256xf32>
    %359 = arith.mulf %358, %53 : vector<2x256xf32>
    %360 = arith.addf %357, %359 : vector<2x256xf32>
    %361 = arith.addf %353, %360 : vector<2x256xf32>
    %c32 = arith.constant 32 : index
    %362 = memref.load %arg1[%c32] : memref<98xf32, #tpu.memory_space<smem>>
    %c81 = arith.constant 81 : index
    %363 = memref.load %arg1[%c81] : memref<98xf32, #tpu.memory_space<smem>>
    %364 = vector.broadcast %362 : f32 to vector<2x256xf32>
    %365 = arith.mulf %364, %62 : vector<2x256xf32>
    %366 = vector.broadcast %363 : f32 to vector<2x256xf32>
    %367 = arith.mulf %366, %64 : vector<2x256xf32>
    %368 = arith.addf %365, %367 : vector<2x256xf32>
    %369 = arith.addf %361, %368 : vector<2x256xf32>
    %c33 = arith.constant 33 : index
    %370 = memref.load %arg1[%c33] : memref<98xf32, #tpu.memory_space<smem>>
    %c82 = arith.constant 82 : index
    %371 = memref.load %arg1[%c82] : memref<98xf32, #tpu.memory_space<smem>>
    %372 = vector.broadcast %370 : f32 to vector<2x256xf32>
    %373 = arith.mulf %372, %73 : vector<2x256xf32>
    %374 = vector.broadcast %371 : f32 to vector<2x256xf32>
    %375 = arith.mulf %374, %75 : vector<2x256xf32>
    %376 = arith.addf %373, %375 : vector<2x256xf32>
    %377 = arith.addf %369, %376 : vector<2x256xf32>
    %c34 = arith.constant 34 : index
    %378 = memref.load %arg1[%c34] : memref<98xf32, #tpu.memory_space<smem>>
    %c83 = arith.constant 83 : index
    %379 = memref.load %arg1[%c83] : memref<98xf32, #tpu.memory_space<smem>>
    %380 = vector.broadcast %378 : f32 to vector<2x256xf32>
    %381 = arith.mulf %380, %84 : vector<2x256xf32>
    %382 = vector.broadcast %379 : f32 to vector<2x256xf32>
    %383 = arith.mulf %382, %86 : vector<2x256xf32>
    %384 = arith.addf %381, %383 : vector<2x256xf32>
    %385 = arith.addf %377, %384 : vector<2x256xf32>
    %386 = vector.extract_strided_slice %385 {offsets = [0, 16], sizes = [2, 240], strides = [1, 1]} : vector<2x256xf32> to vector<2x240xf32>
    %387 = vector.extract_strided_slice %385 {offsets = [0, 0], sizes = [2, 16], strides = [1, 1]} : vector<2x256xf32> to vector<2x16xf32>
    %388 = tpu.concatenate %386, %387 in 1 : vector<2x240xf32>, vector<2x16xf32> -> vector<2x256xf32>
    %c11_34 = arith.constant 11 : index
    %c0_35 = arith.constant 0 : index
    %389 = vector.load %arg2[%c11_34, %c0_35] : memref<14x256xf32, #tpu.memory_space<vmem>>, vector<1x256xf32>
    %390 = vector.broadcast %389 : vector<1x256xf32> to vector<2x256xf32>
    %391 = arith.mulf %390, %388 : vector<2x256xf32>
    %392 = arith.addf %330, %391 : vector<2x256xf32>
    %c35 = arith.constant 35 : index
    %393 = memref.load %arg1[%c35] : memref<98xf32, #tpu.memory_space<smem>>
    %c84 = arith.constant 84 : index
    %394 = memref.load %arg1[%c84] : memref<98xf32, #tpu.memory_space<smem>>
    %395 = vector.broadcast %393 : f32 to vector<2x256xf32>
    %396 = arith.mulf %395, %24 : vector<2x256xf32>
    %397 = vector.broadcast %394 : f32 to vector<2x256xf32>
    %398 = arith.mulf %397, %26 : vector<2x256xf32>
    %399 = arith.addf %396, %398 : vector<2x256xf32>
    %c36 = arith.constant 36 : index
    %400 = memref.load %arg1[%c36] : memref<98xf32, #tpu.memory_space<smem>>
    %c85 = arith.constant 85 : index
    %401 = memref.load %arg1[%c85] : memref<98xf32, #tpu.memory_space<smem>>
    %402 = vector.broadcast %400 : f32 to vector<2x256xf32>
    %403 = arith.mulf %402, %35 : vector<2x256xf32>
    %404 = vector.broadcast %401 : f32 to vector<2x256xf32>
    %405 = arith.mulf %404, %37 : vector<2x256xf32>
    %406 = arith.addf %403, %405 : vector<2x256xf32>
    %407 = arith.addf %399, %406 : vector<2x256xf32>
    %c37 = arith.constant 37 : index
    %408 = memref.load %arg1[%c37] : memref<98xf32, #tpu.memory_space<smem>>
    %c86 = arith.constant 86 : index
    %409 = memref.load %arg1[%c86] : memref<98xf32, #tpu.memory_space<smem>>
    %410 = vector.broadcast %408 : f32 to vector<2x256xf32>
    %411 = arith.mulf %410, %46 : vector<2x256xf32>
    %412 = vector.broadcast %409 : f32 to vector<2x256xf32>
    %413 = arith.mulf %412, %48 : vector<2x256xf32>
    %414 = arith.addf %411, %413 : vector<2x256xf32>
    %415 = arith.addf %407, %414 : vector<2x256xf32>
    %c38 = arith.constant 38 : index
    %416 = memref.load %arg1[%c38] : memref<98xf32, #tpu.memory_space<smem>>
    %c87 = arith.constant 87 : index
    %417 = memref.load %arg1[%c87] : memref<98xf32, #tpu.memory_space<smem>>
    %418 = vector.broadcast %416 : f32 to vector<2x256xf32>
    %419 = arith.mulf %418, %51 : vector<2x256xf32>
    %420 = vector.broadcast %417 : f32 to vector<2x256xf32>
    %421 = arith.mulf %420, %53 : vector<2x256xf32>
    %422 = arith.addf %419, %421 : vector<2x256xf32>
    %423 = arith.addf %415, %422 : vector<2x256xf32>
    %c39 = arith.constant 39 : index
    %424 = memref.load %arg1[%c39] : memref<98xf32, #tpu.memory_space<smem>>
    %c88 = arith.constant 88 : index
    %425 = memref.load %arg1[%c88] : memref<98xf32, #tpu.memory_space<smem>>
    %426 = vector.broadcast %424 : f32 to vector<2x256xf32>
    %427 = arith.mulf %426, %62 : vector<2x256xf32>
    %428 = vector.broadcast %425 : f32 to vector<2x256xf32>
    %429 = arith.mulf %428, %64 : vector<2x256xf32>
    %430 = arith.addf %427, %429 : vector<2x256xf32>
    %431 = arith.addf %423, %430 : vector<2x256xf32>
    %c40 = arith.constant 40 : index
    %432 = memref.load %arg1[%c40] : memref<98xf32, #tpu.memory_space<smem>>
    %c89 = arith.constant 89 : index
    %433 = memref.load %arg1[%c89] : memref<98xf32, #tpu.memory_space<smem>>
    %434 = vector.broadcast %432 : f32 to vector<2x256xf32>
    %435 = arith.mulf %434, %73 : vector<2x256xf32>
    %436 = vector.broadcast %433 : f32 to vector<2x256xf32>
    %437 = arith.mulf %436, %75 : vector<2x256xf32>
    %438 = arith.addf %435, %437 : vector<2x256xf32>
    %439 = arith.addf %431, %438 : vector<2x256xf32>
    %c41 = arith.constant 41 : index
    %440 = memref.load %arg1[%c41] : memref<98xf32, #tpu.memory_space<smem>>
    %c90 = arith.constant 90 : index
    %441 = memref.load %arg1[%c90] : memref<98xf32, #tpu.memory_space<smem>>
    %442 = vector.broadcast %440 : f32 to vector<2x256xf32>
    %443 = arith.mulf %442, %84 : vector<2x256xf32>
    %444 = vector.broadcast %441 : f32 to vector<2x256xf32>
    %445 = arith.mulf %444, %86 : vector<2x256xf32>
    %446 = arith.addf %443, %445 : vector<2x256xf32>
    %447 = arith.addf %439, %446 : vector<2x256xf32>
    %448 = vector.extract_strided_slice %447 {offsets = [0, 32], sizes = [2, 224], strides = [1, 1]} : vector<2x256xf32> to vector<2x224xf32>
    %449 = vector.extract_strided_slice %447 {offsets = [0, 0], sizes = [2, 32], strides = [1, 1]} : vector<2x256xf32> to vector<2x32xf32>
    %450 = tpu.concatenate %448, %449 in 1 : vector<2x224xf32>, vector<2x32xf32> -> vector<2x256xf32>
    %c12_36 = arith.constant 12 : index
    %c0_37 = arith.constant 0 : index
    %451 = vector.load %arg2[%c12_36, %c0_37] : memref<14x256xf32, #tpu.memory_space<vmem>>, vector<1x256xf32>
    %452 = vector.broadcast %451 : vector<1x256xf32> to vector<2x256xf32>
    %453 = arith.mulf %452, %450 : vector<2x256xf32>
    %454 = arith.addf %392, %453 : vector<2x256xf32>
    %c42 = arith.constant 42 : index
    %455 = memref.load %arg1[%c42] : memref<98xf32, #tpu.memory_space<smem>>
    %c91 = arith.constant 91 : index
    %456 = memref.load %arg1[%c91] : memref<98xf32, #tpu.memory_space<smem>>
    %457 = vector.broadcast %455 : f32 to vector<2x256xf32>
    %458 = arith.mulf %457, %24 : vector<2x256xf32>
    %459 = vector.broadcast %456 : f32 to vector<2x256xf32>
    %460 = arith.mulf %459, %26 : vector<2x256xf32>
    %461 = arith.addf %458, %460 : vector<2x256xf32>
    %c43 = arith.constant 43 : index
    %462 = memref.load %arg1[%c43] : memref<98xf32, #tpu.memory_space<smem>>
    %c92 = arith.constant 92 : index
    %463 = memref.load %arg1[%c92] : memref<98xf32, #tpu.memory_space<smem>>
    %464 = vector.broadcast %462 : f32 to vector<2x256xf32>
    %465 = arith.mulf %464, %35 : vector<2x256xf32>
    %466 = vector.broadcast %463 : f32 to vector<2x256xf32>
    %467 = arith.mulf %466, %37 : vector<2x256xf32>
    %468 = arith.addf %465, %467 : vector<2x256xf32>
    %469 = arith.addf %461, %468 : vector<2x256xf32>
    %c44 = arith.constant 44 : index
    %470 = memref.load %arg1[%c44] : memref<98xf32, #tpu.memory_space<smem>>
    %c93 = arith.constant 93 : index
    %471 = memref.load %arg1[%c93] : memref<98xf32, #tpu.memory_space<smem>>
    %472 = vector.broadcast %470 : f32 to vector<2x256xf32>
    %473 = arith.mulf %472, %46 : vector<2x256xf32>
    %474 = vector.broadcast %471 : f32 to vector<2x256xf32>
    %475 = arith.mulf %474, %48 : vector<2x256xf32>
    %476 = arith.addf %473, %475 : vector<2x256xf32>
    %477 = arith.addf %469, %476 : vector<2x256xf32>
    %c45 = arith.constant 45 : index
    %478 = memref.load %arg1[%c45] : memref<98xf32, #tpu.memory_space<smem>>
    %c94 = arith.constant 94 : index
    %479 = memref.load %arg1[%c94] : memref<98xf32, #tpu.memory_space<smem>>
    %480 = vector.broadcast %478 : f32 to vector<2x256xf32>
    %481 = arith.mulf %480, %51 : vector<2x256xf32>
    %482 = vector.broadcast %479 : f32 to vector<2x256xf32>
    %483 = arith.mulf %482, %53 : vector<2x256xf32>
    %484 = arith.addf %481, %483 : vector<2x256xf32>
    %485 = arith.addf %477, %484 : vector<2x256xf32>
    %c46 = arith.constant 46 : index
    %486 = memref.load %arg1[%c46] : memref<98xf32, #tpu.memory_space<smem>>
    %c95 = arith.constant 95 : index
    %487 = memref.load %arg1[%c95] : memref<98xf32, #tpu.memory_space<smem>>
    %488 = vector.broadcast %486 : f32 to vector<2x256xf32>
    %489 = arith.mulf %488, %62 : vector<2x256xf32>
    %490 = vector.broadcast %487 : f32 to vector<2x256xf32>
    %491 = arith.mulf %490, %64 : vector<2x256xf32>
    %492 = arith.addf %489, %491 : vector<2x256xf32>
    %493 = arith.addf %485, %492 : vector<2x256xf32>
    %c47 = arith.constant 47 : index
    %494 = memref.load %arg1[%c47] : memref<98xf32, #tpu.memory_space<smem>>
    %c96 = arith.constant 96 : index
    %495 = memref.load %arg1[%c96] : memref<98xf32, #tpu.memory_space<smem>>
    %496 = vector.broadcast %494 : f32 to vector<2x256xf32>
    %497 = arith.mulf %496, %73 : vector<2x256xf32>
    %498 = vector.broadcast %495 : f32 to vector<2x256xf32>
    %499 = arith.mulf %498, %75 : vector<2x256xf32>
    %500 = arith.addf %497, %499 : vector<2x256xf32>
    %501 = arith.addf %493, %500 : vector<2x256xf32>
    %c48 = arith.constant 48 : index
    %502 = memref.load %arg1[%c48] : memref<98xf32, #tpu.memory_space<smem>>
    %c97 = arith.constant 97 : index
    %503 = memref.load %arg1[%c97] : memref<98xf32, #tpu.memory_space<smem>>
    %504 = vector.broadcast %502 : f32 to vector<2x256xf32>
    %505 = arith.mulf %504, %84 : vector<2x256xf32>
    %506 = vector.broadcast %503 : f32 to vector<2x256xf32>
    %507 = arith.mulf %506, %86 : vector<2x256xf32>
    %508 = arith.addf %505, %507 : vector<2x256xf32>
    %509 = arith.addf %501, %508 : vector<2x256xf32>
    %510 = vector.extract_strided_slice %509 {offsets = [0, 48], sizes = [2, 208], strides = [1, 1]} : vector<2x256xf32> to vector<2x208xf32>
    %511 = vector.extract_strided_slice %509 {offsets = [0, 0], sizes = [2, 48], strides = [1, 1]} : vector<2x256xf32> to vector<2x48xf32>
    %512 = tpu.concatenate %510, %511 in 1 : vector<2x208xf32>, vector<2x48xf32> -> vector<2x256xf32>
    %c13_38 = arith.constant 13 : index
    %c0_39 = arith.constant 0 : index
    %513 = vector.load %arg2[%c13_38, %c0_39] : memref<14x256xf32, #tpu.memory_space<vmem>>, vector<1x256xf32>
    %514 = vector.broadcast %513 : vector<1x256xf32> to vector<2x256xf32>
    %515 = arith.mulf %514, %512 : vector<2x256xf32>
    %516 = arith.addf %454, %515 : vector<2x256xf32>
    %517 = arith.negf %516 : vector<2x256xf32>
    %518 = math.exp %517 : vector<2x256xf32>
    %cst_40 = arith.constant 1.000000e+00 : f32
    %519 = vector.broadcast %cst_40 : f32 to vector<2x256xf32>
    %520 = arith.addf %519, %518 : vector<2x256xf32>
    %521 = arith.divf %519, %520 : vector<2x256xf32>
    %c0_41 = arith.constant 0 : index
    %c0_42 = arith.constant 0 : index
    %c0_43 = arith.constant 0 : index
    %522 = vector.load %arg4[%c0_41, %c0_42, %c0_43] : memref<2x1x256xf32, #tpu.memory_space<vmem>>, vector<2x1x256xf32>
    %523 = vector.shape_cast %522 : vector<2x1x256xf32> to vector<2x256xf32>
    %524 = vector.shape_cast %521 : vector<2x256xf32> to vector<2x1x256xf32>
    tpu.vector_store %arg4[%c0_41, %c0_42, %c0_43], %524 {strides = array<i32>} : memref<2x1x256xf32, #tpu.memory_space<vmem>>, vector<2x1x256xf32>,
    return
  }
  func.func @transform_0(%arg0: i32, %arg1: memref<98xf32, #tpu.memory_space<smem>>) -> (i32, i32) {
    %c0_i32 = arith.constant 0 : i32
    %c0_i32_0 = arith.constant 0 : i32
    %c0_i32_1 = arith.constant 0 : i32
    return %c0_i32, %c0_i32_0 : i32, i32
  }
  func.func @transform_1(%arg0: i32, %arg1: memref<98xf32, #tpu.memory_space<smem>>) -> (i32, i32, i32) {
    %c0_i32 = arith.constant 0 : i32
    %c0_i32_0 = arith.constant 0 : i32
    %c0_i32_1 = arith.constant 0 : i32
    return %arg0, %c0_i32, %c0_i32_0 : i32, i32, i32
  }
  func.func @transform_2(%arg0: i32, %arg1: memref<98xf32, #tpu.memory_space<smem>>) -> (i32, i32, i32) {
    %c0_i32 = arith.constant 0 : i32
    %c0_i32_0 = arith.constant 0 : i32
    %c0_i32_1 = arith.constant 0 : i32
    return %arg0, %c0_i32, %c0_i32_0 : i32, i32, i32
  }
}

</mosaic_0001>

<llo_original>
// kernel: tpu_custom_call.1
$region0: #{tpu_custom_call.1}
  #allocation0 [shape = 'u32[]', space=smem, size = 0x4, offset = 0x4, fixed_abs, tag = 'smem constant byte address 0x4 - core index']
  #allocation1 [shape = 'u32[144,128]{1,0:T(1,128)}', space=vmem, size = 0x12000, scoped, tag = 'internal scratch']
  #allocation2 [shape = 's32[1]{0}', space=sflag, size = 0x4, scoped, tag = 'scoped memory for tpu_custom_call.1']
  #allocation3 [shape = 'u8[512]{0}', space=smem, size = 0x200, scoped, tag = 'prefetched SMEM operand 0']
  %s0 = inlined_call_operand.hbm [shape: f32[98], index: 0, kind: input, shape index: {}]
  %s1 = inlined_call_operand.hbm [shape: f32[14,256], index: 1, kind: input, shape index: {}]
  %s2 = inlined_call_operand.hbm [shape: f32[2,4,256], index: 2, kind: input, shape index: {}]
  %s3 = inlined_call_operand.hbm [shape: f32[2,1,256], index: 3, kind: output, shape index: {}]
  %s4 = sld [smem:[#allocation0]]
  $region26: #{tpu_custom_call.1} parent=0
    _
  %s6 = ssub.s32 1, %s4
  %s7 = scalar_select 0, %s6, %s4
  %9 = dma.hbm_to_smem %s0, 16, [#allocation3], [#allocation2]
  %10 = dma.done [#allocation2], 16
  %11 = sfence
  $region1: #{tpu_custom_call.1} parent=0
    #allocation4 [shape = 'u8[16384]{0}', space=vmem, size = 0x4000, scoped, tag = 'input window, operand 1, single buffered']
    #allocation5 [shape = 's32[1]{0}', space=sflag, size = 0x4, scoped, tag = 'scoped memory for tpu_custom_call.1']
    #allocation6 [shape = 's32[1]{0}', space=sflag, size = 0x4, scoped, tag = 'scoped memory for tpu_custom_call.1']
    #allocation7 [shape = 'u8[8192]{0}', space=vmem, size = 0x2000, scoped, tag = 'input window, operand 2, single buffered']
    #allocation8 [shape = 's32[1]{0}', space=sflag, size = 0x4, scoped, tag = 'scoped memory for tpu_custom_call.1']
    #allocation9 [shape = 'u8[2048]{0}', space=vmem, size = 0x800, scoped, tag = 'output window, operand 0, single buffered']
    %12 = vsyncpa [#allocation5], 0
    %13 = vsyncpa [#allocation8], 0
    %14 = vsyncpa [#allocation6], 0
    // Predicated region
    $region2: #{tpu_custom_call.1} parent=1 // pred_check
      _
    $region3: #{tpu_custom_call.1} parent=1 // pred_check_branch
      %16 = sbr.rel (0) target = $region5
    $region4: #{tpu_custom_call.1} parent=1 // pred_region
      %s18 = ssub.s32 512, 512
      %19 = vsyncadd [#allocation5], %s18
      %s20 = sshll.u32 [#allocation4], 4
      %s21 = int_to_ptr.vmem [resolvable:$true] %s20
      %26 = dma.hbm_to_vmem [thread:$0]  %s1, 512, %s21, [#allocation5], 256, 256, 16
    $region5: #{tpu_custom_call.1} parent=1 // pred_fallthru
      _
    // Predicated region
    $region6: #{tpu_custom_call.1} parent=1 // pred_check
      _
    $region7: #{tpu_custom_call.1} parent=1 // pred_check_branch
      %28 = sbr.rel (0) target = $region9
    $region8: #{tpu_custom_call.1} parent=1 // pred_region
      %s30 = ssub.s32 256, 256
      %31 = vsyncadd [#allocation8], %s30
      %s32 = sshll.u32 [#allocation7], 4
      %s33 = int_to_ptr.vmem [resolvable:$true] %s32
      %38 = dma.hbm_to_vmem [thread:$0]  %s2, 256, %s33, [#allocation8], 128, 128, 8
    $region9: #{tpu_custom_call.1} parent=1 // pred_fallthru
      _
    // Predicated region
    $region10: #{tpu_custom_call.1} parent=1 // pred_check
      _
    $region11: #{tpu_custom_call.1} parent=1 // pred_check_branch
      %40 = sbr.rel (0) target = $region13
    $region12: #{tpu_custom_call.1} parent=1 // pred_region
      %41 = dma.done [#allocation5], 512
    $region13: #{tpu_custom_call.1} parent=1 // pred_fallthru
      _
    // Predicated region
    $region14: #{tpu_custom_call.1} parent=1 // pred_check
      _
    $region15: #{tpu_custom_call.1} parent=1 // pred_check_branch
      %43 = sbr.rel (0) target = $region17
    $region16: #{tpu_custom_call.1} parent=1 // pred_region
      %44 = dma.done [#allocation8], 256
    $region17: #{tpu_custom_call.1} parent=1 // pred_fallthru
      _
    %v45 = vld [vmem:[#allocation7] ss:$4 sm:$0x3]
    %s46 = scalar_lea.vmem [#allocation7], 8
    %v47 = vld [vmem:[%s46] ss:$4 sm:$0x3]
    %s48 = scalar_lea.vmem [#allocation7], 1
    %v49 = vld [vmem:[%s48] ss:$4 sm:$0x3]
    %s50 = scalar_lea.vmem [#allocation7], 9
    %v51 = vld [vmem:[%s50] ss:$4 sm:$0x3]
    %v52 = vadd.f32 %v45, %v49
    %v53 = vadd.f32 %v47, %v51
    %v54 = vmax.f32 %v45, %v49
    %v55 = vmax.f32 %v47, %v51
    %s56 = scalar_lea.vmem [#allocation7], 2
    %v57 = vld [vmem:[%s56] ss:$4 sm:$0x3]
    %s58 = scalar_lea.vmem [#allocation7], 10
    %v59 = vld [vmem:[%s58] ss:$4 sm:$0x3]
    %v60 = vadd.f32 %v52, %v57
    %v61 = vadd.f32 %v53, %v59
    %v62 = vmax.f32 %v54, %v57
    %v63 = vmax.f32 %v55, %v59
    %s64 = scalar_lea.vmem [#allocation7], 3
    %v65 = vld [vmem:[%s64] ss:$4 sm:$0x3]
    %s66 = scalar_lea.vmem [#allocation7], 11
    %v67 = vld [vmem:[%s66] ss:$4 sm:$0x3]
    %v68 = vadd.f32 %v60, %v65
    %v69 = vadd.f32 %v61, %v67
    %v70 = vmax.f32 %v62, %v65
    %v71 = vmax.f32 %v63, %v67
    %v72 = vmul.f32 %v68, 0.25
    %v73 = vmul.f32 %v69, 0.25
    %v74 = vld [vmem:[#allocation4] ss:$8 sm:$0x3]
    %v77 = vcombine.low %v72, %v73
    %v79 = vunpack.c.l.s4 1966171168
    %v80 = vunpack.c.0.s8 %v79
    %v81 = vlaneseq
    %v82 = vshrl.u32 %v81, 7
    %v83 = vsub.s32 %v80, %v82
    %v84 = vrot.slane %v77, %v83
    %v85 = vcombine.high %v84, %v84
    %v87 = vunpack.c.l.s4 1966171168
    %v88 = vunpack.c.0.s8 %v87
    %v89 = vlaneseq
    %v90 = vshrl.u32 %v89, 7
    %v91 = vsub.s32 %v88, %v90
    %v92 = vrot.slane %v85, %v91
    %93 = vrot.lane.b32.xlu0 %v92, 3
    %v94 = vpop.permute.xlu0 %93
    %v97 = vunpack.c.l.s4 1966171168
    %v98 = vunpack.c.0.s8 %v97
    %v99 = vlaneseq
    %v100 = vshrl.u32 %v99, 7
    %v101 = vsub.s32 %v98, %v100
    %v102 = vrot.slane %v84, %v101
    %103 = vrot.lane.b32.xlu0 %v102, 3
    %v104 = vpop.permute.xlu0 %103
    %vm105 = vcmask 23552
    %v106 = vsel %vm105, %v104, %v94
    %v109 = vsel %vm105, %v94, %v104
    %v112 = vcombine.low %v70, %v71
    %v114 = vunpack.c.l.s4 1966171168
    %v115 = vunpack.c.0.s8 %v114
    %v116 = vlaneseq
    %v117 = vshrl.u32 %v116, 7
    %v118 = vsub.s32 %v115, %v117
    %v119 = vrot.slane %v112, %v118
    %v120 = vcombine.high %v119, %v119
    %v122 = vunpack.c.l.s4 1966171168
    %v123 = vunpack.c.0.s8 %v122
    %v124 = vlaneseq
    %v125 = vshrl.u32 %v124, 7
    %v126 = vsub.s32 %v123, %v125
    %v127 = vrot.slane %v120, %v126
    %128 = vrot.lane.b32.xlu0 %v127, 3
    %v129 = vpop.permute.xlu0 %128
    %v132 = vunpack.c.l.s4 1966171168
    %v133 = vunpack.c.0.s8 %v132
    %v134 = vlaneseq
    %v135 = vshrl.u32 %v134, 7
    %v136 = vsub.s32 %v133, %v135
    %v137 = vrot.slane %v119, %v136
    %138 = vrot.lane.b32.xlu0 %v137, 3
    %v139 = vpop.permute.xlu0 %138
    %v140 = vsel %vm105, %v139, %v129
    %v143 = vsel %vm105, %v129, %v139
    %v145 = vlaneseq
    %v146 = vshrl.u32 %v145, 7
    %v147 = vsub.s32 0, %v146
    %v148 = vrot.slane %v74, %v147
    %v149 = vlaneseq
    %v150 = vshrl.u32 %v149, 7
    %v151 = vsub.s32 1, %v150
    %v152 = vrot.slane %v74, %v151
    %v155 = vmul.f32 %v148, %v109
    %v156 = vmul.f32 %v152, %v106
    %v157 = vmul.f32 %v148, %v143
    %v158 = vmul.f32 %v152, %v140
    %s159 = scalar_lea.vmem [#allocation4], 1
    %v160 = vld [vmem:[%s159] ss:$8 sm:$0x3]
    %161 = vrot.lane.b32.xlu0 %v92, 2
    %v162 = vpop.permute.xlu0 %161
    %164 = vrot.lane.b32.xlu0 %v102, 2
    %v165 = vpop.permute.xlu0 %164
    %vm166 = vcmask 15360
    %v167 = vsel %vm166, %v165, %v162
    %v170 = vsel %vm166, %v162, %v165
    %171 = vrot.lane.b32.xlu0 %v127, 2
    %v172 = vpop.permute.xlu0 %171
    %174 = vrot.lane.b32.xlu0 %v137, 2
    %v175 = vpop.permute.xlu0 %174
    %v176 = vsel %vm166, %v175, %v172
    %v179 = vsel %vm166, %v172, %v175
    %v181 = vlaneseq
    %v182 = vshrl.u32 %v181, 7
    %v183 = vsub.s32 0, %v182
    %v184 = vrot.slane %v160, %v183
    %v185 = vlaneseq
    %v186 = vshrl.u32 %v185, 7
    %v187 = vsub.s32 1, %v186
    %v188 = vrot.slane %v160, %v187
    %v191 = vmul.f32 %v184, %v170
    %v192 = vmul.f32 %v188, %v167
    %v193 = vmul.f32 %v184, %v179
    %v194 = vmul.f32 %v188, %v176
    %s195 = scalar_lea.vmem [#allocation4], 2
    %v196 = vld [vmem:[%s195] ss:$8 sm:$0x3]
    %197 = vrot.lane.b32.xlu0 %v92, 1
    %v198 = vpop.permute.xlu0 %197
    %200 = vrot.lane.b32.xlu0 %v102, 1
    %v201 = vpop.permute.xlu0 %200
    %vm202 = vcmask 7168
    %v203 = vsel %vm202, %v201, %v198
    %v206 = vsel %vm202, %v198, %v201
    %207 = vrot.lane.b32.xlu0 %v127, 1
    %v208 = vpop.permute.xlu0 %207
    %210 = vrot.lane.b32.xlu0 %v137, 1
    %v211 = vpop.permute.xlu0 %210
    %v212 = vsel %vm202, %v211, %v208
    %v215 = vsel %vm202, %v208, %v211
    %v217 = vlaneseq
    %v218 = vshrl.u32 %v217, 7
    %v219 = vsub.s32 0, %v218
    %v220 = vrot.slane %v196, %v219
    %v221 = vlaneseq
    %v222 = vshrl.u32 %v221, 7
    %v223 = vsub.s32 1, %v222
    %v224 = vrot.slane %v196, %v223
    %v227 = vmul.f32 %v220, %v206
    %v228 = vmul.f32 %v224, %v203
    %v229 = vmul.f32 %v220, %v215
    %v230 = vmul.f32 %v224, %v212
    %s231 = scalar_lea.vmem [#allocation4], 3
    %v232 = vld [vmem:[%s231] ss:$8 sm:$0x3]
    %v234 = vlaneseq
    %v235 = vshrl.u32 %v234, 7
    %v236 = vsub.s32 0, %v235
    %v237 = vrot.slane %v232, %v236
    %v238 = vlaneseq
    %v239 = vshrl.u32 %v238, 7
    %v240 = vsub.s32 1, %v239
    %v241 = vrot.slane %v232, %v240
    %v246 = vmul.f32 %v237, %v102
    %v247 = vmul.f32 %v241, %v92
    %v250 = vmul.f32 %v237, %v137
    %v251 = vmul.f32 %v241, %v127
    %s252 = scalar_lea.vmem [#allocation4], 4
    %v253 = vld [vmem:[%s252] ss:$8 sm:$0x3]
    %254 = vrot.lane.b32.xlu0 %v102, 127
    %v255 = vpop.permute.xlu0 %254
    %256 = vrot.lane.b32.xlu0 %v92, 127
    %v257 = vpop.permute.xlu0 %256
    %vm258 = vcmask 1039360
    %v259 = vsel %vm258, %v255, %v257
    %v263 = vsel %vm258, %v257, %v255
    %264 = vrot.lane.b32.xlu0 %v137, 127
    %v265 = vpop.permute.xlu0 %264
    %266 = vrot.lane.b32.xlu0 %v127, 127
    %v267 = vpop.permute.xlu0 %266
    %v268 = vsel %vm258, %v265, %v267
    %v272 = vsel %vm258, %v267, %v265
    %v274 = vlaneseq
    %v275 = vshrl.u32 %v274, 7
    %v276 = vsub.s32 0, %v275
    %v277 = vrot.slane %v253, %v276
    %v278 = vlaneseq
    %v279 = vshrl.u32 %v278, 7
    %v280 = vsub.s32 1, %v279
    %v281 = vrot.slane %v253, %v280
    %v284 = vmul.f32 %v277, %v259
    %v285 = vmul.f32 %v281, %v263
    %v286 = vmul.f32 %v277, %v268
    %v287 = vmul.f32 %v281, %v272
    %s288 = scalar_lea.vmem [#allocation4], 5
    %v289 = vld [vmem:[%s288] ss:$8 sm:$0x3]
    %290 = vrot.lane.b32.xlu0 %v102, 126
    %v291 = vpop.permute.xlu0 %290
    %292 = vrot.lane.b32.xlu0 %v92, 126
    %v293 = vpop.permute.xlu0 %292
    %vm294 = vcmask 1031168
    %v295 = vsel %vm294, %v291, %v293
    %v299 = vsel %vm294, %v293, %v291
    %300 = vrot.lane.b32.xlu0 %v137, 126
    %v301 = vpop.permute.xlu0 %300
    %302 = vrot.lane.b32.xlu0 %v127, 126
    %v303 = vpop.permute.xlu0 %302
    %v304 = vsel %vm294, %v301, %v303
    %v308 = vsel %vm294, %v303, %v301
    %v310 = vlaneseq
    %v311 = vshrl.u32 %v310, 7
    %v312 = vsub.s32 0, %v311
    %v313 = vrot.slane %v289, %v312
    %v314 = vlaneseq
    %v315 = vshrl.u32 %v314, 7
    %v316 = vsub.s32 1, %v315
    %v317 = vrot.slane %v289, %v316
    %v320 = vmul.f32 %v313, %v295
    %v321 = vmul.f32 %v317, %v299
    %v322 = vmul.f32 %v313, %v304
    %v323 = vmul.f32 %v317, %v308
    %s324 = scalar_lea.vmem [#allocation4], 6
    %v325 = vld [vmem:[%s324] ss:$8 sm:$0x3]
    %326 = vrot.lane.b32.xlu0 %v102, 125
    %v327 = vpop.permute.xlu0 %326
    %328 = vrot.lane.b32.xlu0 %v92, 125
    %v329 = vpop.permute.xlu0 %328
    %vm330 = vcmask 1022976
    %v331 = vsel %vm330, %v327, %v329
    %v335 = vsel %vm330, %v329, %v327
    %336 = vrot.lane.b32.xlu0 %v137, 125
    %v337 = vpop.permute.xlu0 %336
    %338 = vrot.lane.b32.xlu0 %v127, 125
    %v339 = vpop.permute.xlu0 %338
    %v340 = vsel %vm330, %v337, %v339
    %v344 = vsel %vm330, %v339, %v337
    %v346 = vlaneseq
    %v347 = vshrl.u32 %v346, 7
    %v348 = vsub.s32 0, %v347
    %v349 = vrot.slane %v325, %v348
    %v350 = vlaneseq
    %v351 = vshrl.u32 %v350, 7
    %v352 = vsub.s32 1, %v351
    %v353 = vrot.slane %v325, %v352
    %v356 = vmul.f32 %v349, %v331
    %v357 = vmul.f32 %v353, %v335
    %v358 = vmul.f32 %v349, %v340
    %v359 = vmul.f32 %v353, %v344
    %s360 = sld [smem:[#allocation3]]
    %s361 = sld [smem:[#allocation3 + $0x31]]
    %v362 = vstv %s360
    %v363 = vmul.f32 %v362, %v155
    %v364 = vmul.f32 %v362, %v156
    %v365 = vstv %s361
    %v366 = vmul.f32 %v365, %v157
    %v367 = vmul.f32 %v365, %v158
    %v368 = vadd.f32 %v363, %v366
    %v369 = vadd.f32 %v364, %v367
    %s370 = sld [smem:[#allocation3 + $0x1]]
    %s371 = sld [smem:[#allocation3 + $0x32]]
    %v372 = vstv %s370
    %v373 = vmul.f32 %v372, %v191
    %v374 = vmul.f32 %v372, %v192
    %v375 = vstv %s371
    %v376 = vmul.f32 %v375, %v193
    %v377 = vmul.f32 %v375, %v194
    %v378 = vadd.f32 %v373, %v376
    %v379 = vadd.f32 %v374, %v377
    %v380 = vadd.f32 %v368, %v378
    %v381 = vadd.f32 %v369, %v379
    %s382 = sld [smem:[#allocation3 + $0x2]]
    %s383 = sld [smem:[#allocation3 + $0x33]]
    %v384 = vstv %s382
    %v385 = vmul.f32 %v384, %v227
    %v386 = vmul.f32 %v384, %v228
    %v387 = vstv %s383
    %v388 = vmul.f32 %v387, %v229
    %v389 = vmul.f32 %v387, %v230
    %v390 = vadd.f32 %v385, %v388
    %v391 = vadd.f32 %v386, %v389
    %v392 = vadd.f32 %v380, %v390
    %v393 = vadd.f32 %v381, %v391
    %s394 = sld [smem:[#allocation3 + $0x3]]
    %s395 = sld [smem:[#allocation3 + $0x34]]
    %v396 = vstv %s394
    %v397 = vmul.f32 %v396, %v246
    %v398 = vmul.f32 %v396, %v247
    %v399 = vstv %s395
    %v400 = vmul.f32 %v399, %v250
    %v401 = vmul.f32 %v399, %v251
    %v402 = vadd.f32 %v397, %v400
    %v403 = vadd.f32 %v398, %v401
    %v404 = vadd.f32 %v392, %v402
    %v405 = vadd.f32 %v393, %v403
    %s406 = sld [smem:[#allocation3 + $0x4]]
    %s407 = sld [smem:[#allocation3 + $0x35]]
    %v408 = vstv %s406
    %v409 = vmul.f32 %v408, %v284
    %v410 = vmul.f32 %v408, %v285
    %v411 = vstv %s407
    %v412 = vmul.f32 %v411, %v286
    %v413 = vmul.f32 %v411, %v287
    %v414 = vadd.f32 %v409, %v412
    %v415 = vadd.f32 %v410, %v413
    %v416 = vadd.f32 %v404, %v414
    %v417 = vadd.f32 %v405, %v415
    %s418 = sld [smem:[#allocation3 + $0x5]]
    %s419 = sld [smem:[#allocation3 + $0x36]]
    %v420 = vstv %s418
    %v421 = vmul.f32 %v420, %v320
    %v422 = vmul.f32 %v420, %v321
    %v423 = vstv %s419
    %v424 = vmul.f32 %v423, %v322
    %v425 = vmul.f32 %v423, %v323
    %v426 = vadd.f32 %v421, %v424
    %v427 = vadd.f32 %v422, %v425
    %v428 = vadd.f32 %v416, %v426
    %v429 = vadd.f32 %v417, %v427
    %s430 = sld [smem:[#allocation3 + $0x6]]
    %s431 = sld [smem:[#allocation3 + $0x37]]
    %v432 = vstv %s430
    %v433 = vmul.f32 %v432, %v356
    %v434 = vmul.f32 %v432, %v357
    %v435 = vstv %s431
    %v436 = vmul.f32 %v435, %v358
    %v437 = vmul.f32 %v435, %v359
    %v438 = vadd.f32 %v433, %v436
    %v439 = vadd.f32 %v434, %v437
    %v440 = vadd.f32 %v428, %v438
    %v441 = vadd.f32 %v429, %v439
    %443 = vrot.lane.b32.xlu0 %v441, 48
    %v444 = vpop.permute.xlu0 %443
    %447 = vrot.lane.b32.xlu0 %v440, 48
    %v448 = vpop.permute.xlu0 %447
    %vm449 = vcmask 392192
    %v450 = vsel %vm449, %v448, %v444
    %v453 = vsel %vm449, %v444, %v448
    %s454 = scalar_lea.vmem [#allocation4], 7
    %v455 = vld [vmem:[%s454] ss:$8 sm:$0x3]
    %v457 = vlaneseq
    %v458 = vshrl.u32 %v457, 7
    %v459 = vsub.s32 0, %v458
    %v460 = vrot.slane %v455, %v459
    %v461 = vlaneseq
    %v462 = vshrl.u32 %v461, 7
    %v463 = vsub.s32 1, %v462
    %v464 = vrot.slane %v455, %v463
    %v467 = vmul.f32 %v460, %v453
    %v468 = vmul.f32 %v464, %v450
    %s469 = sld [smem:[#allocation3 + $0x7]]
    %s470 = sld [smem:[#allocation3 + $0x38]]
    %v471 = vstv %s469
    %v472 = vmul.f32 %v471, %v155
    %v473 = vmul.f32 %v471, %v156
    %v474 = vstv %s470
    %v475 = vmul.f32 %v474, %v157
    %v476 = vmul.f32 %v474, %v158
    %v477 = vadd.f32 %v472, %v475
    %v478 = vadd.f32 %v473, %v476
    %s479 = sld [smem:[#allocation3 + $0x8]]
    %s480 = sld [smem:[#allocation3 + $0x39]]
    %v481 = vstv %s479
    %v482 = vmul.f32 %v481, %v191
    %v483 = vmul.f32 %v481, %v192
    %v484 = vstv %s480
    %v485 = vmul.f32 %v484, %v193
    %v486 = vmul.f32 %v484, %v194
    %v487 = vadd.f32 %v482, %v485
    %v488 = vadd.f32 %v483, %v486
    %v489 = vadd.f32 %v477, %v487
    %v490 = vadd.f32 %v478, %v488
    %s491 = sld [smem:[#allocation3 + $0x9]]
    %s492 = sld [smem:[#allocation3 + $0x3a]]
    %v493 = vstv %s491
    %v494 = vmul.f32 %v493, %v227
    %v495 = vmul.f32 %v493, %v228
    %v496 = vstv %s492
    %v497 = vmul.f32 %v496, %v229
    %v498 = vmul.f32 %v496, %v230
    %v499 = vadd.f32 %v494, %v497
    %v500 = vadd.f32 %v495, %v498
    %v501 = vadd.f32 %v489, %v499
    %v502 = vadd.f32 %v490, %v500
    %s503 = sld [smem:[#allocation3 + $0xa]]
    %s504 = sld [smem:[#allocation3 + $0x3b]]
    %v505 = vstv %s503
    %v506 = vmul.f32 %v505, %v246
    %v507 = vmul.f32 %v505, %v247
    %v508 = vstv %s504
    %v509 = vmul.f32 %v508, %v250
    %v510 = vmul.f32 %v508, %v251
    %v511 = vadd.f32 %v506, %v509
    %v512 = vadd.f32 %v507, %v510
    %v513 = vadd.f32 %v501, %v511
    %v514 = vadd.f32 %v502, %v512
    %s515 = sld [smem:[#allocation3 + $0xb]]
    %s516 = sld [smem:[#allocation3 + $0x3c]]
    %v517 = vstv %s515
    %v518 = vmul.f32 %v517, %v284
    %v519 = vmul.f32 %v517, %v285
    %v520 = vstv %s516
    %v521 = vmul.f32 %v520, %v286
    %v522 = vmul.f32 %v520, %v287
    %v523 = vadd.f32 %v518, %v521
    %v524 = vadd.f32 %v519, %v522
    %v525 = vadd.f32 %v513, %v523
    %v526 = vadd.f32 %v514, %v524
    %s527 = sld [smem:[#allocation3 + $0xc]]
    %s528 = sld [smem:[#allocation3 + $0x3d]]
    %v529 = vstv %s527
    %v530 = vmul.f32 %v529, %v320
    %v531 = vmul.f32 %v529, %v321
    %v532 = vstv %s528
    %v533 = vmul.f32 %v532, %v322
    %v534 = vmul.f32 %v532, %v323
    %v535 = vadd.f32 %v530, %v533
    %v536 = vadd.f32 %v531, %v534
    %v537 = vadd.f32 %v525, %v535
    %v538 = vadd.f32 %v526, %v536
    %s539 = sld [smem:[#allocation3 + $0xd]]
    %s540 = sld [smem:[#allocation3 + $0x3e]]
    %v541 = vstv %s539
    %v542 = vmul.f32 %v541, %v356
    %v543 = vmul.f32 %v541, %v357
    %v544 = vstv %s540
    %v545 = vmul.f32 %v544, %v358
    %v546 = vmul.f32 %v544, %v359
    %v547 = vadd.f32 %v542, %v545
    %v548 = vadd.f32 %v543, %v546
    %v549 = vadd.f32 %v537, %v547
    %v550 = vadd.f32 %v538, %v548
    %552 = vrot.lane.b32.xlu0 %v550, 32
    %v553 = vpop.permute.xlu0 %552
    %556 = vrot.lane.b32.xlu0 %v549, 32
    %v557 = vpop.permute.xlu0 %556
    %vm558 = vcmask 261120
    %v559 = vsel %vm558, %v557, %v553
    %v562 = vsel %vm558, %v553, %v557
    %s563 = scalar_lea.vmem [#allocation4], 16
    %v564 = vld [vmem:[%s563] ss:$8 sm:$0x3]
    %v566 = vlaneseq
    %v567 = vshrl.u32 %v566, 7
    %v568 = vsub.s32 0, %v567
    %v569 = vrot.slane %v564, %v568
    %v570 = vlaneseq
    %v571 = vshrl.u32 %v570, 7
    %v572 = vsub.s32 1, %v571
    %v573 = vrot.slane %v564, %v572
    %v576 = vmul.f32 %v569, %v562
    %v577 = vmul.f32 %v573, %v559
    %v578 = vadd.f32 %v467, %v576
    %v579 = vadd.f32 %v468, %v577
    %s580 = sld [smem:[#allocation3 + $0xe]]
    %s581 = sld [smem:[#allocation3 + $0x3f]]
    %v582 = vstv %s580
    %v583 = vmul.f32 %v582, %v155
    %v584 = vmul.f32 %v582, %v156
    %v585 = vstv %s581
    %v586 = vmul.f32 %v585, %v157
    %v587 = vmul.f32 %v585, %v158
    %v588 = vadd.f32 %v583, %v586
    %v589 = vadd.f32 %v584, %v587
    %s590 = sld [smem:[#allocation3 + $0xf]]
    %s591 = sld [smem:[#allocation3 + $0x40]]
    %v592 = vstv %s590
    %v593 = vmul.f32 %v592, %v191
    %v594 = vmul.f32 %v592, %v192
    %v595 = vstv %s591
    %v596 = vmul.f32 %v595, %v193
    %v597 = vmul.f32 %v595, %v194
    %v598 = vadd.f32 %v593, %v596
    %v599 = vadd.f32 %v594, %v597
    %v600 = vadd.f32 %v588, %v598
    %v601 = vadd.f32 %v589, %v599
    %s602 = sld [smem:[#allocation3 + $0x10]]
    %s603 = sld [smem:[#allocation3 + $0x41]]
    %v604 = vstv %s602
    %v605 = vmul.f32 %v604, %v227
    %v606 = vmul.f32 %v604, %v228
    %v607 = vstv %s603
    %v608 = vmul.f32 %v607, %v229
    %v609 = vmul.f32 %v607, %v230
    %v610 = vadd.f32 %v605, %v608
    %v611 = vadd.f32 %v606, %v609
    %v612 = vadd.f32 %v600, %v610
    %v613 = vadd.f32 %v601, %v611
    %s614 = sld [smem:[#allocation3 + $0x11]]
    %s615 = sld [smem:[#allocation3 + $0x42]]
    %v616 = vstv %s614
    %v617 = vmul.f32 %v616, %v246
    %v618 = vmul.f32 %v616, %v247
    %v619 = vstv %s615
    %v620 = vmul.f32 %v619, %v250
    %v621 = vmul.f32 %v619, %v251
    %v622 = vadd.f32 %v617, %v620
    %v623 = vadd.f32 %v618, %v621
    %v624 = vadd.f32 %v612, %v622
    %v625 = vadd.f32 %v613, %v623
    %s626 = sld [smem:[#allocation3 + $0x12]]
    %s627 = sld [smem:[#allocation3 + $0x43]]
    %v628 = vstv %s626
    %v629 = vmul.f32 %v628, %v284
    %v630 = vmul.f32 %v628, %v285
    %v631 = vstv %s627
    %v632 = vmul.f32 %v631, %v286
    %v633 = vmul.f32 %v631, %v287
    %v634 = vadd.f32 %v629, %v632
    %v635 = vadd.f32 %v630, %v633
    %v636 = vadd.f32 %v624, %v634
    %v637 = vadd.f32 %v625, %v635
    %s638 = sld [smem:[#allocation3 + $0x13]]
    %s639 = sld [smem:[#allocation3 + $0x44]]
    %v640 = vstv %s638
    %v641 = vmul.f32 %v640, %v320
    %v642 = vmul.f32 %v640, %v321
    %v643 = vstv %s639
    %v644 = vmul.f32 %v643, %v322
    %v645 = vmul.f32 %v643, %v323
    %v646 = vadd.f32 %v641, %v644
    %v647 = vadd.f32 %v642, %v645
    %v648 = vadd.f32 %v636, %v646
    %v649 = vadd.f32 %v637, %v647
    %s650 = sld [smem:[#allocation3 + $0x14]]
    %s651 = sld [smem:[#allocation3 + $0x45]]
    %v652 = vstv %s650
    %v653 = vmul.f32 %v652, %v356
    %v654 = vmul.f32 %v652, %v357
    %v655 = vstv %s651
    %v656 = vmul.f32 %v655, %v358
    %v657 = vmul.f32 %v655, %v359
    %v658 = vadd.f32 %v653, %v656
    %v659 = vadd.f32 %v654, %v657
    %v660 = vadd.f32 %v648, %v658
    %v661 = vadd.f32 %v649, %v659
    %663 = vrot.lane.b32.xlu0 %v661, 16
    %v664 = vpop.permute.xlu0 %663
    %667 = vrot.lane.b32.xlu0 %v660, 16
    %v668 = vpop.permute.xlu0 %667
    %vm669 = vcmask 130048
    %v670 = vsel %vm669, %v668, %v664
    %v673 = vsel %vm669, %v664, %v668
    %s674 = scalar_lea.vmem [#allocation4], 17
    %v675 = vld [vmem:[%s674] ss:$8 sm:$0x3]
    %v677 = vlaneseq
    %v678 = vshrl.u32 %v677, 7
    %v679 = vsub.s32 0, %v678
    %v680 = vrot.slane %v675, %v679
    %v681 = vlaneseq
    %v682 = vshrl.u32 %v681, 7
    %v683 = vsub.s32 1, %v682
    %v684 = vrot.slane %v675, %v683
    %v687 = vmul.f32 %v680, %v673
    %v688 = vmul.f32 %v684, %v670
    %v689 = vadd.f32 %v578, %v687
    %v690 = vadd.f32 %v579, %v688
    %s691 = sld [smem:[#allocation3 + $0x15]]
    %s692 = sld [smem:[#allocation3 + $0x46]]
    %v693 = vstv %s691
    %v694 = vmul.f32 %v693, %v155
    %v695 = vmul.f32 %v693, %v156
    %v696 = vstv %s692
    %v697 = vmul.f32 %v696, %v157
    %v698 = vmul.f32 %v696, %v158
    %v699 = vadd.f32 %v694, %v697
    %v700 = vadd.f32 %v695, %v698
    %s701 = sld [smem:[#allocation3 + $0x16]]
    %s702 = sld [smem:[#allocation3 + $0x47]]
    %v703 = vstv %s701
    %v704 = vmul.f32 %v703, %v191
    %v705 = vmul.f32 %v703, %v192
    %v706 = vstv %s702
    %v707 = vmul.f32 %v706, %v193
    %v708 = vmul.f32 %v706, %v194
    %v709 = vadd.f32 %v704, %v707
    %v710 = vadd.f32 %v705, %v708
    %v711 = vadd.f32 %v699, %v709
    %v712 = vadd.f32 %v700, %v710
    %s713 = sld [smem:[#allocation3 + $0x17]]
    %s714 = sld [smem:[#allocation3 + $0x48]]
    %v715 = vstv %s713
    %v716 = vmul.f32 %v715, %v227
    %v717 = vmul.f32 %v715, %v228
    %v718 = vstv %s714
    %v719 = vmul.f32 %v718, %v229
    %v720 = vmul.f32 %v718, %v230
    %v721 = vadd.f32 %v716, %v719
    %v722 = vadd.f32 %v717, %v720
    %v723 = vadd.f32 %v711, %v721
    %v724 = vadd.f32 %v712, %v722
    %s725 = sld [smem:[#allocation3 + $0x18]]
    %s726 = sld [smem:[#allocation3 + $0x49]]
    %v727 = vstv %s725
    %v728 = vmul.f32 %v727, %v246
    %v729 = vmul.f32 %v727, %v247
    %v730 = vstv %s726
    %v731 = vmul.f32 %v730, %v250
    %v732 = vmul.f32 %v730, %v251
    %v733 = vadd.f32 %v728, %v731
    %v734 = vadd.f32 %v729, %v732
    %v735 = vadd.f32 %v723, %v733
    %v736 = vadd.f32 %v724, %v734
    %s737 = sld [smem:[#allocation3 + $0x19]]
    %s738 = sld [smem:[#allocation3 + $0x4a]]
    %v739 = vstv %s737
    %v740 = vmul.f32 %v739, %v284
    %v741 = vmul.f32 %v739, %v285
    %v742 = vstv %s738
    %v743 = vmul.f32 %v742, %v286
    %v744 = vmul.f32 %v742, %v287
    %v745 = vadd.f32 %v740, %v743
    %v746 = vadd.f32 %v741, %v744
    %v747 = vadd.f32 %v735, %v745
    %v748 = vadd.f32 %v736, %v746
    %s749 = sld [smem:[#allocation3 + $0x1a]]
    %s750 = sld [smem:[#allocation3 + $0x4b]]
    %v751 = vstv %s749
    %v752 = vmul.f32 %v751, %v320
    %v753 = vmul.f32 %v751, %v321
    %v754 = vstv %s750
    %v755 = vmul.f32 %v754, %v322
    %v756 = vmul.f32 %v754, %v323
    %v757 = vadd.f32 %v752, %v755
    %v758 = vadd.f32 %v753, %v756
    %v759 = vadd.f32 %v747, %v757
    %v760 = vadd.f32 %v748, %v758
    %s761 = sld [smem:[#allocation3 + $0x1b]]
    %s762 = sld [smem:[#allocation3 + $0x4c]]
    %v763 = vstv %s761
    %v764 = vmul.f32 %v763, %v356
    %v765 = vmul.f32 %v763, %v357
    %v766 = vstv %s762
    %v767 = vmul.f32 %v766, %v358
    %v768 = vmul.f32 %v766, %v359
    %v769 = vadd.f32 %v764, %v767
    %v770 = vadd.f32 %v765, %v768
    %v771 = vadd.f32 %v759, %v769
    %v772 = vadd.f32 %v760, %v770
    %s773 = scalar_lea.vmem [#allocation4], 18
    %v774 = vld [vmem:[%s773] ss:$8 sm:$0x3]
    %v776 = vlaneseq
    %v777 = vshrl.u32 %v776, 7
    %v778 = vsub.s32 0, %v777
    %v779 = vrot.slane %v774, %v778
    %v780 = vlaneseq
    %v781 = vshrl.u32 %v780, 7
    %v782 = vsub.s32 1, %v781
    %v783 = vrot.slane %v774, %v782
    %v786 = vmul.f32 %v779, %v771
    %v787 = vmul.f32 %v783, %v772
    %v788 = vadd.f32 %v689, %v786
    %v789 = vadd.f32 %v690, %v787
    %s790 = sld [smem:[#allocation3 + $0x1c]]
    %s791 = sld [smem:[#allocation3 + $0x4d]]
    %v792 = vstv %s790
    %v793 = vmul.f32 %v792, %v155
    %v794 = vmul.f32 %v792, %v156
    %v795 = vstv %s791
    %v796 = vmul.f32 %v795, %v157
    %v797 = vmul.f32 %v795, %v158
    %v798 = vadd.f32 %v793, %v796
    %v799 = vadd.f32 %v794, %v797
    %s800 = sld [smem:[#allocation3 + $0x1d]]
    %s801 = sld [smem:[#allocation3 + $0x4e]]
    %v802 = vstv %s800
    %v803 = vmul.f32 %v802, %v191
    %v804 = vmul.f32 %v802, %v192
    %v805 = vstv %s801
    %v806 = vmul.f32 %v805, %v193
    %v807 = vmul.f32 %v805, %v194
    %v808 = vadd.f32 %v803, %v806
    %v809 = vadd.f32 %v804, %v807
    %v810 = vadd.f32 %v798, %v808
    %v811 = vadd.f32 %v799, %v809
    %s812 = sld [smem:[#allocation3 + $0x1e]]
    %s813 = sld [smem:[#allocation3 + $0x4f]]
    %v814 = vstv %s812
    %v815 = vmul.f32 %v814, %v227
    %v816 = vmul.f32 %v814, %v228
    %v817 = vstv %s813
    %v818 = vmul.f32 %v817, %v229
    %v819 = vmul.f32 %v817, %v230
    %v820 = vadd.f32 %v815, %v818
    %v821 = vadd.f32 %v816, %v819
    %v822 = vadd.f32 %v810, %v820
    %v823 = vadd.f32 %v811, %v821
    %s824 = sld [smem:[#allocation3 + $0x1f]]
    %s825 = sld [smem:[#allocation3 + $0x50]]
    %v826 = vstv %s824
    %v827 = vmul.f32 %v826, %v246
    %v828 = vmul.f32 %v826, %v247
    %v829 = vstv %s825
    %v830 = vmul.f32 %v829, %v250
    %v831 = vmul.f32 %v829, %v251
    %v832 = vadd.f32 %v827, %v830
    %v833 = vadd.f32 %v828, %v831
    %v834 = vadd.f32 %v822, %v832
    %v835 = vadd.f32 %v823, %v833
    %s836 = sld [smem:[#allocation3 + $0x20]]
    %s837 = sld [smem:[#allocation3 + $0x51]]
    %v838 = vstv %s836
    %v839 = vmul.f32 %v838, %v284
    %v840 = vmul.f32 %v838, %v285
    %v841 = vstv %s837
    %v842 = vmul.f32 %v841, %v286
    %v843 = vmul.f32 %v841, %v287
    %v844 = vadd.f32 %v839, %v842
    %v845 = vadd.f32 %v840, %v843
    %v846 = vadd.f32 %v834, %v844
    %v847 = vadd.f32 %v835, %v845
    %s848 = sld [smem:[#allocation3 + $0x21]]
    %s849 = sld [smem:[#allocation3 + $0x52]]
    %v850 = vstv %s848
    %v851 = vmul.f32 %v850, %v320
    %v852 = vmul.f32 %v850, %v321
    %v853 = vstv %s849
    %v854 = vmul.f32 %v853, %v322
    %v855 = vmul.f32 %v853, %v323
    %v856 = vadd.f32 %v851, %v854
    %v857 = vadd.f32 %v852, %v855
    %v858 = vadd.f32 %v846, %v856
    %v859 = vadd.f32 %v847, %v857
    %s860 = sld [smem:[#allocation3 + $0x22]]
    %s861 = sld [smem:[#allocation3 + $0x53]]
    %v862 = vstv %s860
    %v863 = vmul.f32 %v862, %v356
    %v864 = vmul.f32 %v862, %v357
    %v865 = vstv %s861
    %v866 = vmul.f32 %v865, %v358
    %v867 = vmul.f32 %v865, %v359
    %v868 = vadd.f32 %v863, %v866
    %v869 = vadd.f32 %v864, %v867
    %v870 = vadd.f32 %v858, %v868
    %v871 = vadd.f32 %v859, %v869
    %874 = vrot.lane.b32.xlu0 %v870, 112
    %v875 = vpop.permute.xlu0 %874
    %876 = vrot.lane.b32.xlu0 %v871, 112
    %v877 = vpop.permute.xlu0 %876
    %vm878 = vcmask 916480
    %v879 = vsel %vm878, %v875, %v877
    %v883 = vsel %vm878, %v877, %v875
    %s884 = scalar_lea.vmem [#allocation4], 19
    %v885 = vld [vmem:[%s884] ss:$8 sm:$0x3]
    %v887 = vlaneseq
    %v888 = vshrl.u32 %v887, 7
    %v889 = vsub.s32 0, %v888
    %v890 = vrot.slane %v885, %v889
    %v891 = vlaneseq
    %v892 = vshrl.u32 %v891, 7
    %v893 = vsub.s32 1, %v892
    %v894 = vrot.slane %v885, %v893
    %v897 = vmul.f32 %v890, %v879
    %v898 = vmul.f32 %v894, %v883
    %v899 = vadd.f32 %v788, %v897
    %v900 = vadd.f32 %v789, %v898
    %s901 = sld [smem:[#allocation3 + $0x23]]
    %s902 = sld [smem:[#allocation3 + $0x54]]
    %v903 = vstv %s901
    %v904 = vmul.f32 %v903, %v155
    %v905 = vmul.f32 %v903, %v156
    %v906 = vstv %s902
    %v907 = vmul.f32 %v906, %v157
    %v908 = vmul.f32 %v906, %v158
    %v909 = vadd.f32 %v904, %v907
    %v910 = vadd.f32 %v905, %v908
    %s911 = sld [smem:[#allocation3 + $0x24]]
    %s912 = sld [smem:[#allocation3 + $0x55]]
    %v913 = vstv %s911
    %v914 = vmul.f32 %v913, %v191
    %v915 = vmul.f32 %v913, %v192
    %v916 = vstv %s912
    %v917 = vmul.f32 %v916, %v193
    %v918 = vmul.f32 %v916, %v194
    %v919 = vadd.f32 %v914, %v917
    %v920 = vadd.f32 %v915, %v918
    %v921 = vadd.f32 %v909, %v919
    %v922 = vadd.f32 %v910, %v920
    %s923 = sld [smem:[#allocation3 + $0x25]]
    %s924 = sld [smem:[#allocation3 + $0x56]]
    %v925 = vstv %s923
    %v926 = vmul.f32 %v925, %v227
    %v927 = vmul.f32 %v925, %v228
    %v928 = vstv %s924
    %v929 = vmul.f32 %v928, %v229
    %v930 = vmul.f32 %v928, %v230
    %v931 = vadd.f32 %v926, %v929
    %v932 = vadd.f32 %v927, %v930
    %v933 = vadd.f32 %v921, %v931
    %v934 = vadd.f32 %v922, %v932
    %s935 = sld [smem:[#allocation3 + $0x26]]
    %s936 = sld [smem:[#allocation3 + $0x57]]
    %v937 = vstv %s935
    %v938 = vmul.f32 %v937, %v246
    %v939 = vmul.f32 %v937, %v247
    %v940 = vstv %s936
    %v941 = vmul.f32 %v940, %v250
    %v942 = vmul.f32 %v940, %v251
    %v943 = vadd.f32 %v938, %v941
    %v944 = vadd.f32 %v939, %v942
    %v945 = vadd.f32 %v933, %v943
    %v946 = vadd.f32 %v934, %v944
    %s947 = sld [smem:[#allocation3 + $0x27]]
    %s948 = sld [smem:[#allocation3 + $0x58]]
    %v949 = vstv %s947
    %v950 = vmul.f32 %v949, %v284
    %v951 = vmul.f32 %v949, %v285
    %v952 = vstv %s948
    %v953 = vmul.f32 %v952, %v286
    %v954 = vmul.f32 %v952, %v287
    %v955 = vadd.f32 %v950, %v953
    %v956 = vadd.f32 %v951, %v954
    %v957 = vadd.f32 %v945, %v955
    %v958 = vadd.f32 %v946, %v956
    %s959 = sld [smem:[#allocation3 + $0x28]]
    %s960 = sld [smem:[#allocation3 + $0x59]]
    %v961 = vstv %s959
    %v962 = vmul.f32 %v961, %v320
    %v963 = vmul.f32 %v961, %v321
    %v964 = vstv %s960
    %v965 = vmul.f32 %v964, %v322
    %v966 = vmul.f32 %v964, %v323
    %v967 = vadd.f32 %v962, %v965
    %v968 = vadd.f32 %v963, %v966
    %v969 = vadd.f32 %v957, %v967
    %v970 = vadd.f32 %v958, %v968
    %s971 = sld [smem:[#allocation3 + $0x29]]
    %s972 = sld [smem:[#allocation3 + $0x5a]]
    %v973 = vstv %s971
    %v974 = vmul.f32 %v973, %v356
    %v975 = vmul.f32 %v973, %v357
    %v976 = vstv %s972
    %v977 = vmul.f32 %v976, %v358
    %v978 = vmul.f32 %v976, %v359
    %v979 = vadd.f32 %v974, %v977
    %v980 = vadd.f32 %v975, %v978
    %v981 = vadd.f32 %v969, %v979
    %v982 = vadd.f32 %v970, %v980
    %985 = vrot.lane.b32.xlu0 %v981, 96
    %v986 = vpop.permute.xlu0 %985
    %987 = vrot.lane.b32.xlu0 %v982, 96
    %v988 = vpop.permute.xlu0 %987
    %vm989 = vcmask 785408
    %v990 = vsel %vm989, %v986, %v988
    %v994 = vsel %vm989, %v988, %v986
    %s995 = scalar_lea.vmem [#allocation4], 20
    %v996 = vld [vmem:[%s995] ss:$8 sm:$0x3]
    %v998 = vlaneseq
    %v999 = vshrl.u32 %v998, 7
    %v1000 = vsub.s32 0, %v999
    %v1001 = vrot.slane %v996, %v1000
    %v1002 = vlaneseq
    %v1003 = vshrl.u32 %v1002, 7
    %v1004 = vsub.s32 1, %v1003
    %v1005 = vrot.slane %v996, %v1004
    %v1008 = vmul.f32 %v1001, %v990
    %v1009 = vmul.f32 %v1005, %v994
    %v1010 = vadd.f32 %v899, %v1008
    %v1011 = vadd.f32 %v900, %v1009
    %s1012 = sld [smem:[#allocation3 + $0x2a]]
    %s1013 = sld [smem:[#allocation3 + $0x5b]]
    %v1014 = vstv %s1012
    %v1015 = vmul.f32 %v1014, %v155
    %v1016 = vmul.f32 %v1014, %v156
    %v1017 = vstv %s1013
    %v1018 = vmul.f32 %v1017, %v157
    %v1019 = vmul.f32 %v1017, %v158
    %v1020 = vadd.f32 %v1015, %v1018
    %v1021 = vadd.f32 %v1016, %v1019
    %s1022 = sld [smem:[#allocation3 + $0x2b]]
    %s1023 = sld [smem:[#allocation3 + $0x5c]]
    %v1024 = vstv %s1022
    %v1025 = vmul.f32 %v1024, %v191
    %v1026 = vmul.f32 %v1024, %v192
    %v1027 = vstv %s1023
    %v1028 = vmul.f32 %v1027, %v193
    %v1029 = vmul.f32 %v1027, %v194
    %v1030 = vadd.f32 %v1025, %v1028
    %v1031 = vadd.f32 %v1026, %v1029
    %v1032 = vadd.f32 %v1020, %v1030
    %v1033 = vadd.f32 %v1021, %v1031
    %s1034 = sld [smem:[#allocation3 + $0x2c]]
    %s1035 = sld [smem:[#allocation3 + $0x5d]]
    %v1036 = vstv %s1034
    %v1037 = vmul.f32 %v1036, %v227
    %v1038 = vmul.f32 %v1036, %v228
    %v1039 = vstv %s1035
    %v1040 = vmul.f32 %v1039, %v229
    %v1041 = vmul.f32 %v1039, %v230
    %v1042 = vadd.f32 %v1037, %v1040
    %v1043 = vadd.f32 %v1038, %v1041
    %v1044 = vadd.f32 %v1032, %v1042
    %v1045 = vadd.f32 %v1033, %v1043
    %s1046 = sld [smem:[#allocation3 + $0x2d]]
    %s1047 = sld [smem:[#allocation3 + $0x5e]]
    %v1048 = vstv %s1046
    %v1049 = vmul.f32 %v1048, %v246
    %v1050 = vmul.f32 %v1048, %v247
    %v1051 = vstv %s1047
    %v1052 = vmul.f32 %v1051, %v250
    %v1053 = vmul.f32 %v1051, %v251
    %v1054 = vadd.f32 %v1049, %v1052
    %v1055 = vadd.f32 %v1050, %v1053
    %v1056 = vadd.f32 %v1044, %v1054
    %v1057 = vadd.f32 %v1045, %v1055
    %s1058 = sld [smem:[#allocation3 + $0x2e]]
    %s1059 = sld [smem:[#allocation3 + $0x5f]]
    %v1060 = vstv %s1058
    %v1061 = vmul.f32 %v1060, %v284
    %v1062 = vmul.f32 %v1060, %v285
    %v1063 = vstv %s1059
    %v1064 = vmul.f32 %v1063, %v286
    %v1065 = vmul.f32 %v1063, %v287
    %v1066 = vadd.f32 %v1061, %v1064
    %v1067 = vadd.f32 %v1062, %v1065
    %v1068 = vadd.f32 %v1056, %v1066
    %v1069 = vadd.f32 %v1057, %v1067
    %s1070 = sld [smem:[#allocation3 + $0x2f]]
    %s1071 = sld [smem:[#allocation3 + $0x60]]
    %v1072 = vstv %s1070
    %v1073 = vmul.f32 %v1072, %v320
    %v1074 = vmul.f32 %v1072, %v321
    %v1075 = vstv %s1071
    %v1076 = vmul.f32 %v1075, %v322
    %v1077 = vmul.f32 %v1075, %v323
    %v1078 = vadd.f32 %v1073, %v1076
    %v1079 = vadd.f32 %v1074, %v1077
    %v1080 = vadd.f32 %v1068, %v1078
    %v1081 = vadd.f32 %v1069, %v1079
    %s1082 = sld [smem:[#allocation3 + $0x30]]
    %s1083 = sld [smem:[#allocation3 + $0x61]]
    %v1084 = vstv %s1082
    %v1085 = vmul.f32 %v1084, %v356
    %v1086 = vmul.f32 %v1084, %v357
    %v1087 = vstv %s1083
    %v1088 = vmul.f32 %v1087, %v358
    %v1089 = vmul.f32 %v1087, %v359
    %v1090 = vadd.f32 %v1085, %v1088
    %v1091 = vadd.f32 %v1086, %v1089
    %v1092 = vadd.f32 %v1080, %v1090
    %v1093 = vadd.f32 %v1081, %v1091
    %1096 = vrot.lane.b32.xlu0 %v1092, 80
    %v1097 = vpop.permute.xlu0 %1096
    %1098 = vrot.lane.b32.xlu0 %v1093, 80
    %v1099 = vpop.permute.xlu0 %1098
    %vm1100 = vcmask 654336
    %v1101 = vsel %vm1100, %v1097, %v1099
    %v1105 = vsel %vm1100, %v1099, %v1097
    %s1106 = scalar_lea.vmem [#allocation4], 21
    %v1107 = vld [vmem:[%s1106] ss:$8 sm:$0x3]
    %v1109 = vlaneseq
    %v1110 = vshrl.u32 %v1109, 7
    %v1111 = vsub.s32 0, %v1110
    %v1112 = vrot.slane %v1107, %v1111
    %v1113 = vlaneseq
    %v1114 = vshrl.u32 %v1113, 7
    %v1115 = vsub.s32 1, %v1114
    %v1116 = vrot.slane %v1107, %v1115
    %v1119 = vmul.f32 %v1112, %v1101
    %v1120 = vmul.f32 %v1116, %v1105
    %v1121 = vadd.f32 %v1010, %v1119
    %v1122 = vadd.f32 %v1011, %v1120
    %v1123 = vxor.u32 %v1121, 2147483648
    %v1124 = vxor.u32 %v1122, 2147483648
    %v1125 = vmul.f32 %v1123, 1.442695
    %v1126 = vpow.pop %v1125
    %v1127 = vmul.f32 %v1124, 1.442695
    %v1128 = vpow.pop %v1127
    %v1129 = vadd.f32 %v1126, 1.0
    %v1130 = vadd.f32 %v1128, 1.0
    %v1131 = vrcp.pop %v1129
    %v1132 = vmul.f32 1.0, %v1131
    %v1133 = vrcp.pop %v1130
    %v1134 = vmul.f32 1.0, %v1133
    %v1137 = vcombine.low %v1132, %v1134
    %v1139 = vunpack.c.l.s4 1966171168
    %v1140 = vunpack.c.0.s8 %v1139
    %v1141 = vlaneseq
    %v1142 = vshrl.u32 %v1141, 7
    %v1143 = vsub.s32 %v1140, %v1142
    %v1144 = vrot.slane %v1137, %v1143
    %v1145 = vcombine.high %v1144, %v1144
    %v1147 = vunpack.c.l.s4 1966171168
    %v1148 = vunpack.c.0.s8 %v1147
    %v1149 = vlaneseq
    %v1150 = vshrl.u32 %v1149, 7
    %v1151 = vsub.s32 %v1148, %v1150
    %v1152 = vrot.slane %v1144, %v1151
    %v1154 = vunpack.c.l.s4 1966171168
    %v1155 = vunpack.c.0.s8 %v1154
    %v1156 = vlaneseq
    %v1157 = vshrl.u32 %v1156, 7
    %v1158 = vsub.s32 %v1155, %v1157
    %v1159 = vrot.slane %v1145, %v1158
    %v1162 = vlaneseq
    %vm1163 = vcmp.ge.s32.totalorder %v1162, 0
    %vm1164 = vcmp.lt.s32.totalorder %v1162, 256
    %vm1165 = vmand %vm1163, %vm1164
    %1166 = vst.msk [vmem:[#allocation9] sm:$0x3] %vm1165, %v1152
    %1167 = vst.msk [vmem:[#allocation9 + $0x2] sm:$0x3] %vm1165, %v1159
    // Predicated region
    $region18: #{tpu_custom_call.1} parent=1 // pred_check
      _
    $region19: #{tpu_custom_call.1} parent=1 // pred_check_branch
      %1169 = sbr.rel (0) target = $region21
    $region20: #{tpu_custom_call.1} parent=1 // pred_region
      %s1171 = ssub.s32 64, 64
      %1172 = vsyncadd [#allocation6], %s1171
      %s1173 = sshll.u32 [#allocation9], 4
      %s1174 = int_to_ptr.vmem [resolvable:$true] %s1173
      %1179 = dma.vmem_to_hbm [thread:$0]  %s1174, 64, %s3, [#allocation6], 32, 32, 2
    $region21: #{tpu_custom_call.1} parent=1 // pred_fallthru
      _
    // Predicated region
    $region22: #{tpu_custom_call.1} parent=1 // pred_check
      _
    $region23: #{tpu_custom_call.1} parent=1 // pred_check_branch
      %1181 = sbr.rel (0) target = $region25
    $region24: #{tpu_custom_call.1} parent=1 // pred_region
      %1182 = dma.done [#allocation6], 64
    $region25: #{tpu_custom_call.1} parent=1 // pred_fallthru
      _
    %1183 = vsyncpa [#allocation5], 1
    %1184 = vsyncpa [#allocation8], 1
    %1185 = vsyncpa [#allocation6], 1

</llo_original>
